<compile_context>
chip_gen: v6e
topology: v6e:2x2x1
jax: 0.10.0
libtpu: 0.0.40
codegen_flags: <defaults>
</compile_context>

<pallas_src>
import math

import jax
import jax.numpy as jnp
from jax.experimental import pallas as pl
from jax.experimental.pallas import tpu as pltpu

# ----------------------------- static config --------------------------------
NET_DEPTH = 4
NET_WIDTH = 32
NET_DEPTH_COND = 1
NET_WIDTH_COND = 16
SKIP_INDEX = 2
NUM_RGB = 3
NUM_DENSITY = 1
NUM_OUT = NUM_RGB + NUM_DENSITY
XYZ_DIM = 8
VIEW_DIM = 4

BATCH = 4
NUM_SAMPLES = 512
TILE = 512                     # samples (lanes) per grid step; multiple of 128

# bf16 MXU operands on ALL generations (v5e's MXU is bf16-native; only its
# VPU lacks bf16, and elementwise math here stays f32).
MATMUL_DTYPE = jnp.bfloat16

# The PyTorch module's density_layer expects net_width inputs, so the config
# must not trigger a skip-concat after the *last* trunk layer.
assert not ((NET_DEPTH - 1) % SKIP_INDEX == 0 and (NET_DEPTH - 1) > 0)


def _layer_has_skip_input(i):
    # layer i consumes cat([h, inputs]) iff the *previous* layer triggered skip
    return i > 1 and (i - 1) % SKIP_INDEX == 0


def _round_up(x, m):
    return (x + m - 1) // m * m


def _trunk_in_dim(i):
    if i == 0:
        return XYZ_DIM
    if _layer_has_skip_input(i):
        return NET_WIDTH + XYZ_DIM
    return NET_WIDTH


# (out_dim, in_dim) of every Linear, in consumption order.
LAYER_DIMS = (
    [(NET_WIDTH, _trunk_in_dim(i)) for i in range(NET_DEPTH)]          # trunk
    + [(NUM_DENSITY, NET_WIDTH)]                                        # density
    + [(NET_WIDTH, NET_WIDTH)]                                          # extra
    + [(NET_WIDTH_COND, (NET_WIDTH + VIEW_DIM) if j == 0 else NET_WIDTH_COND)
       for j in range(NET_DEPTH_COND)]                                  # view
    + [(NUM_RGB, NET_WIDTH_COND)]                                       # color
)

IDX_DENSITY = NET_DEPTH
IDX_EXTRA = NET_DEPTH + 1
IDX_VIEW0 = NET_DEPTH + 2
IDX_COLOR = NET_DEPTH + 2 + NET_DEPTH_COND

# Sublane offset of each layer inside the packed parameter slab.
# 16-aligned (bf16 rows pack in pairs) so static row slices never relayout.
ALIGN = 16
LAYER_ROW = [0] * len(LAYER_DIMS)
_off = 0
for _li in range(NET_DEPTH):                                   # trunk
    LAYER_ROW[_li] = _off
    _off = _round_up(_off + LAYER_DIMS[_li][0], ALIGN)
# fused (extra ; density) group — extra rows FIRST so both slices of the fused
# matmul result are sublane-aligned (x2 at offset 0, density at NET_WIDTH).
FUSED_ROW = _off
FUSED_OUT = NET_WIDTH + NUM_DENSITY
LAYER_ROW[IDX_EXTRA] = FUSED_ROW
LAYER_ROW[IDX_DENSITY] = FUSED_ROW + NET_WIDTH
_off = _round_up(FUSED_ROW + FUSED_OUT, ALIGN)
for _li in list(range(IDX_VIEW0, IDX_VIEW0 + NET_DEPTH_COND)) + [IDX_COLOR]:
    LAYER_ROW[_li] = _off
    _off = _round_up(_off + LAYER_DIMS[_li][0], ALIGN)
P_ROWS = _off
MAX_IN = max(d for _, d in LAYER_DIMS)
P_COLS = _round_up(MAX_IN, 8)


# ----------------------------- parameter init -------------------------------
def init_params(key):
    """Per-layer (weight [out, in], bias [out]) in PyTorch nn.Linear layout."""
    weights, biases = [], []
    keys = jax.random.split(key, 2 * len(LAYER_DIMS))
    for li, (dout, din) in enumerate(LAYER_DIMS):
        limit = math.sqrt(6.0 / (din + dout))          # xavier_uniform_
        w = jax.random.uniform(keys[2 * li], (dout, din), jnp.float32,
                               -limit, limit)
        bound = 1.0 / math.sqrt(din)                   # nn.Linear bias default
        b = jax.random.uniform(keys[2 * li + 1], (dout,), jnp.float32,
                               -bound, bound)
        weights.append(w)
        biases.append(b)
    return weights, biases


def pack_params(weights, biases):
    """Pack Linears into one bf16 weight slab [P_ROWS, P_COLS] + f32 bias slab.

    Layer li occupies sublanes LAYER_ROW[li] : LAYER_ROW[li]+out; its [out, in]
    weight sits in lanes [0:in].  Biases stay f32 in a separate [P_ROWS, 1]
    slab with identical row offsets.
    """
    w_slab = jnp.zeros((P_ROWS, P_COLS), jnp.float32)
    b_slab = jnp.zeros((P_ROWS, 1), jnp.float32)
    for li, (w, b) in enumerate(zip(weights, biases)):
        dout, din = w.shape
        r = LAYER_ROW[li]
        w_slab = w_slab.at[r:r + dout, :din].set(w)
        b_slab = b_slab.at[r:r + dout, 0].set(b)
    return w_slab.astype(MATMUL_DTYPE), b_slab


# ------------------------------- kernel --------------------------------------
def mlp_kernel(view_ref, x_ref, w_ref, b_ref, out_ref):
    """One (batch, sample-tile) grid step.

    view_ref: [BATCH, VIEW_DIM]   SMEM (whole array; scalar reads)
    x_ref:    [XYZ_DIM, TILE]     VMEM (channels on sublanes, samples on lanes)
    w_ref:    [P_ROWS, P_COLS]    VMEM bf16 packed weight slab (constant block)
    b_ref:    [P_ROWS, 1]         VMEM f32 packed bias slab (constant block)
    out_ref:  [NUM_OUT, TILE]     VMEM lane-dense output (rgb rows 0:3, dens 3)
    """
    bi = pl.program_id(0)

    def mm(wm, hm):
        # bf16 operands, f32 MXU accumulation; bias adds / ReLU stay f32.
        return jnp.dot(wm, hm, preferred_element_type=jnp.float32)

    def wslice(li, lane_lo, lane_hi):
        r = LAYER_ROW[li]
        dout = LAYER_DIMS[li][0]
        return w_ref[r:r + dout, lane_lo:lane_hi]        # static slice, bf16

    def bslice(li):
        r = LAYER_ROW[li]
        dout = LAYER_DIMS[li][0]
        return b_ref[r:r + dout, :]                      # [out, 1] f32

    x_in = x_ref[...].astype(MATMUL_DTYPE)               # [XYZ_DIM, TILE] bf16
    h = x_in

    # --- trunk ---------------------------------------------------------------
    for i in range(NET_DEPTH):
        if _layer_has_skip_input(i):
            # cat([h, x_in]) along channels == split matmul over lane slices.
            # (two-dot accumulate; optimal on v7x MRB, fine elsewhere)
            z = (mm(wslice(i, 0, NET_WIDTH), h)
                 + mm(wslice(i, NET_WIDTH, NET_WIDTH + XYZ_DIM), x_in))
        else:
            z = mm(wslice(i, 0, _trunk_in_dim(i)), h)
        h = jnp.maximum(z + bslice(i), 0.0).astype(MATMUL_DTYPE)   # f32 ReLU

    # --- fused (extra ; density) head: one [33,32] x [32,TILE] dot ------------
    w_fused = w_ref[FUSED_ROW:FUSED_ROW + FUSED_OUT, 0:NET_WIDTH]
    b_fused = b_ref[FUSED_ROW:FUSED_ROW + FUSED_OUT, :]
    zf = mm(w_fused, h) + b_fused                        # [33, TILE] f32
    dens = zf[NET_WIDTH:NET_WIDTH + NUM_DENSITY, :]      # [1, TILE] f32
    x2 = zf[0:NET_WIDTH, :].astype(MATMUL_DTYPE)         # extra layer (no act)

    # --- view-conditioned layers ----------------------------------------------
    for j in range(NET_DEPTH_COND):
        li = IDX_VIEW0 + j
        if j == 0:
            # cat([x2, view]) -> split matmul.  The view part is identical for
            # every sample of this batch row, so build it from SMEM scalars
            # (no [N, view_dim] HBM stream, no extra matmul).
            w_v = wslice(li, NET_WIDTH, NET_WIDTH + VIEW_DIM)   # [cond, VIEW]
            vc = bslice(li)                                     # [cond, 1] f32
            for d in range(VIEW_DIM):
                vc = vc + w_v[:, d:d + 1].astype(jnp.float32) * view_ref[bi, d]
            z = mm(wslice(li, 0, NET_WIDTH), x2) + vc
        else:
            z = mm(wslice(li, 0, NET_WIDTH_COND), x2) + bslice(li)
        x2 = jnp.maximum(z, 0.0).astype(MATMUL_DTYPE)

    # --- color head + single merged lane-dense store ---------------------------
    rgb = mm(wslice(IDX_COLOR, 0, NET_WIDTH_COND), x2) + bslice(IDX_COLOR)
    out_ref[...] = jnp.concatenate([rgb, dens], axis=0).astype(out_ref.dtype)


# ------------------------------- wrapper --------------------------------------
@jax.jit
def mlp_forward(x, view_direction, w_slab, b_slab):
    """x: [B, S, XYZ_DIM] f32, view_direction: [B, VIEW_DIM] f32."""
    B, S, F = x.shape
    assert F == XYZ_DIM and view_direction.shape == (B, VIEW_DIM)
    S_pad = _round_up(S, TILE)

    # Layout plumbing: channels-on-sublanes / samples-on-lanes.
    x_t = jnp.transpose(x, (0, 2, 1))                    # [B, XYZ_DIM, S]
    if S_pad != S:
        x_t = jnp.pad(x_t, ((0, 0), (0, 0), (0, S_pad - S)))
    n_tiles = S_pad // TILE                              # == 1 at S=512

    out = pl.pallas_call(
        mlp_kernel,
        grid=(B, n_tiles),
        in_specs=[
            # tiny view table lives whole in SMEM (scalar reads per batch row)
            pl.BlockSpec(memory_space=pltpu.MemorySpace.SMEM),
            pl.BlockSpec((None, XYZ_DIM, TILE), lambda b, s: (b, 0, s)),
            # packed bf16 weight slab + f32 bias slab, constant blocks
            pl.BlockSpec((P_ROWS, P_COLS), lambda b, s: (0, 0)),
            pl.BlockSpec((P_ROWS, 1), lambda b, s: (0, 0)),
        ],
        out_specs=pl.BlockSpec((None, NUM_OUT, TILE), lambda b, s: (b, 0, s)),
        out_shape=jax.ShapeDtypeStruct((B, NUM_OUT, S_pad), jnp.float32),
        compiler_params=pltpu.CompilerParams(
            dimension_semantics=("parallel", "parallel")),
    )(view_direction, x_t, w_slab, b_slab)

    rgb = jnp.transpose(out[:, :NUM_RGB, :S], (0, 2, 1))       # [B, S, 3]
    dens = jnp.transpose(out[:, NUM_RGB:, :S], (0, 2, 1))      # [B, S, 1]
    return rgb, dens


# ------------------------- pure-JAX reference ---------------------------------
def ref_forward(x, view_direction, weights, biases, matmul_dtype):
    """Reference of the PyTorch MLP.forward (split-matmul formulation)."""
    B, S, F = x.shape
    xf = x.reshape(B * S, F)
    vf = jnp.broadcast_to(view_direction[:, None, :],
                          (B, S, VIEW_DIM)).reshape(B * S, VIEW_DIM)

    def mm(a, w):            # a: [N, in], w: [out, in]  (PyTorch layout)
        return jnp.dot(a.astype(matmul_dtype), w.T.astype(matmul_dtype),
                       preferred_element_type=jnp.float32)

    h, x_in = xf, xf
    for i in range(NET_DEPTH):
        w, bb = weights[i], biases[i]
        if _layer_has_skip_input(i):
            z = mm(h, w[:, :NET_WIDTH]) + mm(x_in, w[:, NET_WIDTH:]) + bb
        else:
            z = mm(h, w) + bb
        h = jnp.maximum(z, 0.0)

    dens = mm(h, weights[IDX_DENSITY]) + biases[IDX_DENSITY]
    x2 = mm(h, weights[IDX_EXTRA]) + biases[IDX_EXTRA]
    for j in range(NET_DEPTH_COND):
        li = IDX_VIEW0 + j
        w, bb = weights[li], biases[li]
        if j == 0:
            # view term: matmul_dtype-rounded weights, f32 math (mirrors kernel)
            w_view = w[:, NET_WIDTH:].astype(matmul_dtype).astype(jnp.float32)
            z = mm(x2, w[:, :NET_WIDTH]) + vf @ w_view.T + bb
        else:
            z = mm(x2, w) + bb
        x2 = jnp.maximum(z, 0.0)
    rgb = mm(x2, weights[IDX_COLOR]) + biases[IDX_COLOR]
    return rgb.reshape(B, S, NUM_RGB), dens.reshape(B, S, NUM_DENSITY)


# --------------------------------- main ---------------------------------------
if __name__ == "__main__":
    key = jax.random.PRNGKey(0)
    k_params, k_x, k_v = jax.random.split(key, 3)

    weights, biases = init_params(k_params)
    w_slab, b_slab = pack_params(weights, biases)

    x = jax.random.normal(k_x, (BATCH, NUM_SAMPLES, XYZ_DIM), jnp.float32)
    view_direction = jax.random.normal(k_v, (BATCH, VIEW_DIM), jnp.float32)

    rgb, dens = mlp_forward(x, view_direction, w_slab, b_slab)
    rgb = jax.block_until_ready(rgb)
    dens = jax.block_until_ready(dens)
    assert rgb.shape == (BATCH, NUM_SAMPLES, NUM_RGB)
    assert dens.shape == (BATCH, NUM_SAMPLES, NUM_DENSITY)

    # Tight check vs. a reference using the same matmul operand dtype.
    rgb_ref, dens_ref = ref_forward(x, view_direction, weights, biases,
                                    MATMUL_DTYPE)
    assert jnp.allclose(rgb, rgb_ref, atol=2e-3, rtol=2e-3)
    assert jnp.allclose(dens, dens_ref, atol=2e-3, rtol=2e-3)

    # Looser sanity check vs. exact f32 module numerics (covers bf16 rounding).
    rgb_f32, dens_f32 = ref_forward(x, view_direction, weights, biases,
                                    jnp.float32)
    assert jnp.allclose(rgb, rgb_f32, atol=5e-2, rtol=5e-2)
    assert jnp.allclose(dens, dens_f32, atol=5e-2, rtol=5e-2)

    print("KERNEL_OK")
</pallas_src>

<mosaic_0001>
module attributes {stable_mosaic.version = 11 : i64} {
  func.func @mlp_kernel(%arg0: i32, %arg1: i32, %arg2: memref<4x4xf32, #tpu.memory_space<smem>>, %arg3: memref<1x8x512xf32, #tpu.memory_space<vmem>>, %arg4: memref<208x40xbf16, #tpu.memory_space<vmem>>, %arg5: memref<208x1xf32, #tpu.memory_space<vmem>>, %arg6: memref<1x4x512xf32, #tpu.memory_space<vmem>>) attributes {dimension_semantics = [#tpu.dimension_semantics<parallel>, #tpu.dimension_semantics<parallel>], iteration_bounds = array<i64: 4, 1>, scalar_prefetch = 0 : i64, scratch_operands = 0 : i64, tpu.core_type = #tpu.core_type<tc>, window_params = [{transform_indices = @transform_0, window_bounds = array<i64: 4, 4>}, {transform_indices = @transform_1, window_bounds = array<i64: 1, 8, 512>}, {pipeline_mode = #tpu.pipeline_mode<synchronous>, transform_indices = @transform_2, window_bounds = array<i64: 208, 40>}, {pipeline_mode = #tpu.pipeline_mode<synchronous>, transform_indices = @transform_3, window_bounds = array<i64: 208, 1>}, {transform_indices = @transform_4, window_bounds = array<i64: 1, 4, 512>}]} {
    %c0 = arith.constant 0 : index
    %c0_0 = arith.constant 0 : index
    %c0_1 = arith.constant 0 : index
    %0 = vector.load %arg3[%c0, %c0_0, %c0_1] : memref<1x8x512xf32, #tpu.memory_space<vmem>>, vector<1x8x512xf32>
    %1 = vector.shape_cast %0 : vector<1x8x512xf32> to vector<8x512xf32>
    %2 = arith.truncf %1 : vector<8x512xf32> to vector<8x512xbf16>
    %c0_2 = arith.constant 0 : index
    %c0_3 = arith.constant 0 : index
    %3 = vector.load %arg4[%c0_2, %c0_3] : memref<208x40xbf16, #tpu.memory_space<vmem>>, vector<32x8xbf16>
    %cst = arith.constant dense<0.000000e+00> : vector<32x512xf32>
    %4 = tpu.matmul %3, %2, %cst {dimension_numbers = #tpu.dot_dimension_numbers<[1], [0], [0], [1], [0, 0, 1, 1], [], []>} : vector<32x8xbf16>, vector<8x512xbf16>, vector<32x512xf32> -> vector<32x512xf32>
    %c0_4 = arith.constant 0 : index
    %c0_5 = arith.constant 0 : index
    %5 = vector.load %arg5[%c0_4, %c0_5] : memref<208x1xf32, #tpu.memory_space<vmem>>, vector<32x1xf32>
    %6 = vector.broadcast %5 : vector<32x1xf32> to vector<32x512xf32>
    %7 = arith.addf %4, %6 : vector<32x512xf32>
    %cst_6 = arith.constant 0.000000e+00 : f32
    %8 = vector.broadcast %cst_6 : f32 to vector<32x512xf32>
    %9 = arith.maximumf %7, %8 : vector<32x512xf32>
    %10 = arith.truncf %9 : vector<32x512xf32> to vector<32x512xbf16>
    %c32 = arith.constant 32 : index
    %c0_7 = arith.constant 0 : index
    %11 = vector.load %arg4[%c32, %c0_7] : memref<208x40xbf16, #tpu.memory_space<vmem>>, vector<32x32xbf16>
    %cst_8 = arith.constant dense<0.000000e+00> : vector<32x512xf32>
    %12 = tpu.matmul %11, %10, %cst_8 {dimension_numbers = #tpu.dot_dimension_numbers<[1], [0], [0], [1], [0, 0, 1, 1], [], []>} : vector<32x32xbf16>, vector<32x512xbf16>, vector<32x512xf32> -> vector<32x512xf32>
    %c32_9 = arith.constant 32 : index
    %c0_10 = arith.constant 0 : index
    %13 = vector.load %arg5[%c32_9, %c0_10] : memref<208x1xf32, #tpu.memory_space<vmem>>, vector<32x1xf32>
    %14 = vector.broadcast %13 : vector<32x1xf32> to vector<32x512xf32>
    %15 = arith.addf %12, %14 : vector<32x512xf32>
    %cst_11 = arith.constant 0.000000e+00 : f32
    %16 = vector.broadcast %cst_11 : f32 to vector<32x512xf32>
    %17 = arith.maximumf %15, %16 : vector<32x512xf32>
    %18 = arith.truncf %17 : vector<32x512xf32> to vector<32x512xbf16>
    %c64 = arith.constant 64 : index
    %c0_12 = arith.constant 0 : index
    %19 = vector.load %arg4[%c64, %c0_12] : memref<208x40xbf16, #tpu.memory_space<vmem>>, vector<32x32xbf16>
    %cst_13 = arith.constant dense<0.000000e+00> : vector<32x512xf32>
    %20 = tpu.matmul %19, %18, %cst_13 {dimension_numbers = #tpu.dot_dimension_numbers<[1], [0], [0], [1], [0, 0, 1, 1], [], []>} : vector<32x32xbf16>, vector<32x512xbf16>, vector<32x512xf32> -> vector<32x512xf32>
    %c64_14 = arith.constant 64 : index
    %c0_15 = arith.constant 0 : index
    %21 = vector.load %arg5[%c64_14, %c0_15] : memref<208x1xf32, #tpu.memory_space<vmem>>, vector<32x1xf32>
    %22 = vector.broadcast %21 : vector<32x1xf32> to vector<32x512xf32>
    %23 = arith.addf %20, %22 : vector<32x512xf32>
    %cst_16 = arith.constant 0.000000e+00 : f32
    %24 = vector.broadcast %cst_16 : f32 to vector<32x512xf32>
    %25 = arith.maximumf %23, %24 : vector<32x512xf32>
    %26 = arith.truncf %25 : vector<32x512xf32> to vector<32x512xbf16>
    %c96 = arith.constant 96 : index
    %c0_17 = arith.constant 0 : index
    %27 = vector.load %arg4[%c96, %c0_17] : memref<208x40xbf16, #tpu.memory_space<vmem>>, vector<32x32xbf16>
    %cst_18 = arith.constant dense<0.000000e+00> : vector<32x512xf32>
    %28 = tpu.matmul %27, %26, %cst_18 {dimension_numbers = #tpu.dot_dimension_numbers<[1], [0], [0], [1], [0, 0, 1, 1], [], []>} : vector<32x32xbf16>, vector<32x512xbf16>, vector<32x512xf32> -> vector<32x512xf32>
    %c96_19 = arith.constant 96 : index
    %c32_20 = arith.constant 32 : index
    %29 = vector.load %arg4[%c96_19, %c32_20] : memref<208x40xbf16, #tpu.memory_space<vmem>>, vector<32x8xbf16>
    %cst_21 = arith.constant dense<0.000000e+00> : vector<32x512xf32>
    %30 = tpu.matmul %29, %2, %cst_21 {dimension_numbers = #tpu.dot_dimension_numbers<[1], [0], [0], [1], [0, 0, 1, 1], [], []>} : vector<32x8xbf16>, vector<8x512xbf16>, vector<32x512xf32> -> vector<32x512xf32>
    %31 = arith.addf %28, %30 : vector<32x512xf32>
    %c96_22 = arith.constant 96 : index
    %c0_23 = arith.constant 0 : index
    %32 = vector.load %arg5[%c96_22, %c0_23] : memref<208x1xf32, #tpu.memory_space<vmem>>, vector<32x1xf32>
    %33 = vector.broadcast %32 : vector<32x1xf32> to vector<32x512xf32>
    %34 = arith.addf %31, %33 : vector<32x512xf32>
    %cst_24 = arith.constant 0.000000e+00 : f32
    %35 = vector.broadcast %cst_24 : f32 to vector<32x512xf32>
    %36 = arith.maximumf %34, %35 : vector<32x512xf32>
    %37 = arith.truncf %36 : vector<32x512xf32> to vector<32x512xbf16>
    %c128 = arith.constant 128 : index
    %c0_25 = arith.constant 0 : index
    %38 = vector.load %arg4[%c128, %c0_25] : memref<208x40xbf16, #tpu.memory_space<vmem>>, vector<33x32xbf16>
    %c128_26 = arith.constant 128 : index
    %c0_27 = arith.constant 0 : index
    %39 = vector.load %arg5[%c128_26, %c0_27] : memref<208x1xf32, #tpu.memory_space<vmem>>, vector<33x1xf32>
    %cst_28 = arith.constant dense<0.000000e+00> : vector<33x512xf32>
    %40 = tpu.matmul %38, %37, %cst_28 {dimension_numbers = #tpu.dot_dimension_numbers<[1], [0], [0], [1], [0, 0, 1, 1], [], []>} : vector<33x32xbf16>, vector<32x512xbf16>, vector<33x512xf32> -> vector<33x512xf32>
    %41 = vector.broadcast %39 : vector<33x1xf32> to vector<33x512xf32>
    %42 = arith.addf %40, %41 : vector<33x512xf32>
    %43 = vector.extract_strided_slice %42 {offsets = [32, 0], sizes = [1, 512], strides = [1, 1]} : vector<33x512xf32> to vector<1x512xf32>
    %44 = vector.extract_strided_slice %42 {offsets = [0, 0], sizes = [32, 512], strides = [1, 1]} : vector<33x512xf32> to vector<32x512xf32>
    %45 = arith.truncf %44 : vector<32x512xf32> to vector<32x512xbf16>
    %c176 = arith.constant 176 : index
    %c32_29 = arith.constant 32 : index
    %46 = vector.load %arg4[%c176, %c32_29] : memref<208x40xbf16, #tpu.memory_space<vmem>>, vector<16x4xbf16>
    %c176_30 = arith.constant 176 : index
    %c0_31 = arith.constant 0 : index
    %47 = vector.load %arg5[%c176_30, %c0_31] : memref<208x1xf32, #tpu.memory_space<vmem>>, vector<16x1xf32>
    %48 = vector.extract_strided_slice %46 {offsets = [0, 0], sizes = [16, 1], strides = [1, 1]} : vector<16x4xbf16> to vector<16x1xbf16>
    %49 = arith.extf %48 : vector<16x1xbf16> to vector<16x1xf32>
    %50 = arith.index_cast %arg0 : i32 to index
    %c0_32 = arith.constant 0 : index
    %51 = memref.load %arg2[%50, %c0_32] : memref<4x4xf32, #tpu.memory_space<smem>>
    %52 = vector.broadcast %51 : f32 to vector<16x1xf32>
    %53 = arith.mulf %49, %52 : vector<16x1xf32>
    %54 = arith.addf %47, %53 : vector<16x1xf32>
    %55 = vector.extract_strided_slice %46 {offsets = [0, 1], sizes = [16, 1], strides = [1, 1]} : vector<16x4xbf16> to vector<16x1xbf16>
    %56 = arith.extf %55 : vector<16x1xbf16> to vector<16x1xf32>
    %57 = arith.index_cast %arg0 : i32 to index
    %c1 = arith.constant 1 : index
    %58 = memref.load %arg2[%57, %c1] : memref<4x4xf32, #tpu.memory_space<smem>>
    %59 = vector.broadcast %58 : f32 to vector<16x1xf32>
    %60 = arith.mulf %56, %59 : vector<16x1xf32>
    %61 = arith.addf %54, %60 : vector<16x1xf32>
    %62 = vector.extract_strided_slice %46 {offsets = [0, 2], sizes = [16, 1], strides = [1, 1]} : vector<16x4xbf16> to vector<16x1xbf16>
    %63 = arith.extf %62 : vector<16x1xbf16> to vector<16x1xf32>
    %64 = arith.index_cast %arg0 : i32 to index
    %c2 = arith.constant 2 : index
    %65 = memref.load %arg2[%64, %c2] : memref<4x4xf32, #tpu.memory_space<smem>>
    %66 = vector.broadcast %65 : f32 to vector<16x1xf32>
    %67 = arith.mulf %63, %66 : vector<16x1xf32>
    %68 = arith.addf %61, %67 : vector<16x1xf32>
    %69 = vector.extract_strided_slice %46 {offsets = [0, 3], sizes = [16, 1], strides = [1, 1]} : vector<16x4xbf16> to vector<16x1xbf16>
    %70 = arith.extf %69 : vector<16x1xbf16> to vector<16x1xf32>
    %71 = arith.index_cast %arg0 : i32 to index
    %c3 = arith.constant 3 : index
    %72 = memref.load %arg2[%71, %c3] : memref<4x4xf32, #tpu.memory_space<smem>>
    %73 = vector.broadcast %72 : f32 to vector<16x1xf32>
    %74 = arith.mulf %70, %73 : vector<16x1xf32>
    %75 = arith.addf %68, %74 : vector<16x1xf32>
    %c176_33 = arith.constant 176 : index
    %c0_34 = arith.constant 0 : index
    %76 = vector.load %arg4[%c176_33, %c0_34] : memref<208x40xbf16, #tpu.memory_space<vmem>>, vector<16x32xbf16>
    %cst_35 = arith.constant dense<0.000000e+00> : vector<16x512xf32>
    %77 = tpu.matmul %76, %45, %cst_35 {dimension_numbers = #tpu.dot_dimension_numbers<[1], [0], [0], [1], [0, 0, 1, 1], [], []>} : vector<16x32xbf16>, vector<32x512xbf16>, vector<16x512xf32> -> vector<16x512xf32>
    %78 = vector.broadcast %75 : vector<16x1xf32> to vector<16x512xf32>
    %79 = arith.addf %77, %78 : vector<16x512xf32>
    %cst_36 = arith.constant 0.000000e+00 : f32
    %80 = vector.broadcast %cst_36 : f32 to vector<16x512xf32>
    %81 = arith.maximumf %79, %80 : vector<16x512xf32>
    %82 = arith.truncf %81 : vector<16x512xf32> to vector<16x512xbf16>
    %c192 = arith.constant 192 : index
    %c0_37 = arith.constant 0 : index
    %83 = vector.load %arg4[%c192, %c0_37] : memref<208x40xbf16, #tpu.memory_space<vmem>>, vector<3x16xbf16>
    %cst_38 = arith.constant dense<0.000000e+00> : vector<3x512xf32>
    %84 = tpu.matmul %83, %82, %cst_38 {dimension_numbers = #tpu.dot_dimension_numbers<[1], [0], [0], [1], [0, 0, 1, 1], [], []>} : vector<3x16xbf16>, vector<16x512xbf16>, vector<3x512xf32> -> vector<3x512xf32>
    %c192_39 = arith.constant 192 : index
    %c0_40 = arith.constant 0 : index
    %85 = vector.load %arg5[%c192_39, %c0_40] : memref<208x1xf32, #tpu.memory_space<vmem>>, vector<3x1xf32>
    %86 = vector.broadcast %85 : vector<3x1xf32> to vector<3x512xf32>
    %87 = arith.addf %84, %86 : vector<3x512xf32>
    %88 = tpu.concatenate %87, %43 in 0 : vector<3x512xf32>, vector<1x512xf32> -> vector<4x512xf32>
    %c0_41 = arith.constant 0 : index
    %c0_42 = arith.constant 0 : index
    %c0_43 = arith.constant 0 : index
    %89 = vector.load %arg6[%c0_41, %c0_42, %c0_43] : memref<1x4x512xf32, #tpu.memory_space<vmem>>, vector<1x4x512xf32>
    %90 = vector.shape_cast %89 : vector<1x4x512xf32> to vector<4x512xf32>
    %91 = vector.shape_cast %88 : vector<4x512xf32> to vector<1x4x512xf32>
    tpu.vector_store %arg6[%c0_41, %c0_42, %c0_43], %91 {strides = array<i32>} : memref<1x4x512xf32, #tpu.memory_space<vmem>>, vector<1x4x512xf32>,
    return
  }
  func.func @transform_0(%arg0: i32, %arg1: i32) -> (i32, i32) {
    %c0_i32 = arith.constant 0 : i32
    %c0_i32_0 = arith.constant 0 : i32
    %c0_i32_1 = arith.constant 0 : i32
    return %c0_i32, %c0_i32_0 : i32, i32
  }
  func.func @transform_1(%arg0: i32, %arg1: i32) -> (i32, i32, i32) {
    %c0_i32 = arith.constant 0 : i32
    %c0_i32_0 = arith.constant 0 : i32
    return %arg0, %c0_i32, %arg1 : i32, i32, i32
  }
  func.func @transform_2(%arg0: i32, %arg1: i32) -> (i32, i32) {
    %c0_i32 = arith.constant 0 : i32
    %c0_i32_0 = arith.constant 0 : i32
    %c0_i32_1 = arith.constant 0 : i32
    return %c0_i32, %c0_i32_0 : i32, i32
  }
  func.func @transform_3(%arg0: i32, %arg1: i32) -> (i32, i32) {
    %c0_i32 = arith.constant 0 : i32
    %c0_i32_0 = arith.constant 0 : i32
    %c0_i32_1 = arith.constant 0 : i32
    return %c0_i32, %c0_i32_0 : i32, i32
  }
  func.func @transform_4(%arg0: i32, %arg1: i32) -> (i32, i32, i32) {
    %c0_i32 = arith.constant 0 : i32
    %c0_i32_0 = arith.constant 0 : i32
    return %arg0, %c0_i32, %arg1 : i32, i32, i32
  }
}

</mosaic_0001>

<llo_original>
// kernel: mlp_forward.1
$region0: #{mlp_forward.1}
  #allocation0 [shape = 'u32[]', space=smem, size = 0x4, offset = 0x4, fixed_abs, tag = 'smem constant byte address 0x4 - core index']
  #allocation1 [shape = 'u32[144,128]{1,0:T(1,128)}', space=vmem, size = 0x12000, scoped, tag = 'internal scratch']
  %s0 = inlined_call_operand.vmem [shape: f32[4,4], index: 0, kind: input, shape index: {}]
  %s1 = inlined_call_operand.vmem [shape: f32[4,8,512], index: 1, kind: input, shape index: {}]
  %s2 = inlined_call_operand.vmem [shape: bf16[208,40], index: 2, kind: input, shape index: {}]
  %s3 = inlined_call_operand.vmem [shape: f32[208,1], index: 3, kind: input, shape index: {}]
  %s4 = inlined_call_operand.vmem [shape: f32[4,4,512], index: 4, kind: output, shape index: {}]
  %s5 = sld [smem:[#allocation0]]
  $region53: #{mlp_forward.1} parent=0
    _
  %s7 = ssub.s32 1, %s5
  %s8 = scalar_select 0, %s7, %s5
  $region1: #{mlp_forward.1} parent=0
    #allocation2 [shape = 'u8[2048]{0}', space=smem, size = 0x800, scoped, tag = 'input window, operand 0, single buffered']
    #allocation3 [shape = 's32[2]{0}', space=sflag, size = 0x8, scoped, tag = 'scoped memory for mlp_forward.1']
    %9 = vsyncpa [#allocation3], 0
    loop: start=0, step=1, limit=6
    $region2: #{mlp_forward.1} parent=1 // loop_pre_header
      _
    $region3: #{mlp_forward.1} parent=1 // loop_header
      %s11 = sphi 0, %s15
      %p12 = scmp.ge.s32.totalorder %s11, 6
      %s18 = sphi 0, %s30
      %s19 = sphi 0, %s26
      %s20 = sphi 0, %s18
      %s21 = sphi 0, %s19
      %s22 = sphi 0, %s20
      %s23 = sphi 0, %s21
      %s31 = sphi 0, %s31
      %s33 = sphi 0, %s31
      %s34 = sphi 0, %s33
      %s48 = sphi 0, %s34
      %s56 = sphi 0, %s58
      %s59 = sphi 0, %s56
      %s60 = sphi 0, %s59
      %s76 = sphi 0, %s60
      %s80 = sphi 0, %s80
      %s82 = sphi 0, %s80
      %s83 = sphi 0, %s82
      %s97 = sphi 0, %s83
      %s101 = sphi 0, %s101
      %s103 = sphi 0, %s101
      %s104 = sphi 0, %s103
      %s118 = sphi 0, %s104
      %s126 = sphi 0, %s128
      %s129 = sphi 0, %s126
      %s130 = sphi 0, %s129
      %s146 = sphi 0, %s130
    $region4: #{mlp_forward.1} parent=1 // loop_header_branch
      %14 = sbr.rel (%p12) target = $region8
    $region5: #{mlp_forward.1} parent=1 // loop_body
      %s16 = ssub.s32 %s11, 1
      %s17 = ssub.s32 %s11, 2
      %s24 = sadd.s32 1, %s19
      %p25 = scmp.ge.s32.totalorder %s24, 1
      %s26 = scalar_select %p25, 0, %s24
      %s27 = sadd.s32 1, %s18
      %s28 = scalar_select %p25, %s27, %s18
      %p29 = scmp.ge.s32.totalorder %s28, 4
      %s30 = scalar_select %p29, 0, %s28
      %s32 = sadd.s32 %s31, 1
      %p35 = scmp.eq.s32.totalorder %s11, 3
      %p36 = scmp.ne.s32.totalorder %s31, %s33
      %p37 = scmp.eq.s32.totalorder %s11, 0
      %p38 = por %p36, %p37
      %p39 = scmp.ne.s32.totalorder %s31, %s33
      %p40 = scmp.eq.s32.totalorder %s16, 3
      %p41 = por %p39, %p40
      %p42 = scmp.ne.s32.totalorder %s33, %s34
      %p43 = scmp.eq.s32.totalorder %s16, 0
      %p44 = por %p42, %p43
      %p45 = scmp.ne.s32.totalorder %s33, %s34
      %p46 = scmp.eq.s32.totalorder %s17, 3
      %p47 = por %p45, %p46
      %p49 = scmp.ne.s32.totalorder %s34, %s48
      %p50 = scmp.eq.s32.totalorder %s17, 0
      %p51 = por %p49, %p50
      %s52 = ssub.s32 %s18, %s30
      %s53 = ssub.s32 %s19, %s26
      %s54 = sor.u32 %s52, %s53
      %p55 = scmp.eq.s32.totalorder %s54, 0
      %s57 = sadd.s32 %s56, 1
      %s58 = scalar_select %p55, %s56, %s57
      %p61 = pneg %p55
      %p62 = scmp.eq.s32.totalorder %s11, 3
      %p63 = por %p61, %p62
      %p64 = scmp.ne.s32.totalorder %s56, %s59
      %p65 = scmp.eq.s32.totalorder %s11, 0
      %p66 = por %p64, %p65
      %p67 = scmp.ne.s32.totalorder %s56, %s59
      %p68 = scmp.eq.s32.totalorder %s16, 3
      %p69 = por %p67, %p68
      %p70 = scmp.ne.s32.totalorder %s59, %s60
      %p71 = scmp.eq.s32.totalorder %s16, 0
      %p72 = por %p70, %p71
      %p73 = scmp.ne.s32.totalorder %s59, %s60
      %p74 = scmp.eq.s32.totalorder %s17, 3
      %p75 = por %p73, %p74
      %p77 = scmp.ne.s32.totalorder %s60, %s76
      %p78 = scmp.eq.s32.totalorder %s17, 0
      %p79 = por %p77, %p78
      %s81 = sadd.s32 %s80, 1
      %p84 = scmp.eq.s32.totalorder %s11, 3
      %p85 = scmp.ne.s32.totalorder %s80, %s82
      %p86 = scmp.eq.s32.totalorder %s11, 0
      %p87 = por %p85, %p86
      %p88 = scmp.ne.s32.totalorder %s80, %s82
      %p89 = scmp.eq.s32.totalorder %s16, 3
      %p90 = por %p88, %p89
      %p91 = scmp.ne.s32.totalorder %s82, %s83
      %p92 = scmp.eq.s32.totalorder %s16, 0
      %p93 = por %p91, %p92
      %p94 = scmp.ne.s32.totalorder %s82, %s83
      %p95 = scmp.eq.s32.totalorder %s17, 3
      %p96 = por %p94, %p95
      %p98 = scmp.ne.s32.totalorder %s83, %s97
      %p99 = scmp.eq.s32.totalorder %s17, 0
      %p100 = por %p98, %p99
      %s102 = sadd.s32 %s101, 1
      %p105 = scmp.eq.s32.totalorder %s11, 3
      %p106 = scmp.ne.s32.totalorder %s101, %s103
      %p107 = scmp.eq.s32.totalorder %s11, 0
      %p108 = por %p106, %p107
      %p109 = scmp.ne.s32.totalorder %s101, %s103
      %p110 = scmp.eq.s32.totalorder %s16, 3
      %p111 = por %p109, %p110
      %p112 = scmp.ne.s32.totalorder %s103, %s104
      %p113 = scmp.eq.s32.totalorder %s16, 0
      %p114 = por %p112, %p113
      %p115 = scmp.ne.s32.totalorder %s103, %s104
      %p116 = scmp.eq.s32.totalorder %s17, 3
      %p117 = por %p115, %p116
      %p119 = scmp.ne.s32.totalorder %s104, %s118
      %p120 = scmp.eq.s32.totalorder %s17, 0
      %p121 = por %p119, %p120
      %s122 = ssub.s32 %s18, %s30
      %s123 = ssub.s32 %s19, %s26
      %s124 = sor.u32 %s122, %s123
      %p125 = scmp.eq.s32.totalorder %s124, 0
      %s127 = sadd.s32 %s126, 1
      %s128 = scalar_select %p125, %s126, %s127
      %p131 = pneg %p125
      %p132 = scmp.eq.s32.totalorder %s11, 3
      %p133 = por %p131, %p132
      %p134 = scmp.ne.s32.totalorder %s126, %s129
      %p135 = scmp.eq.s32.totalorder %s11, 0
      %p136 = por %p134, %p135
      %p137 = scmp.ne.s32.totalorder %s126, %s129
      %p138 = scmp.eq.s32.totalorder %s16, 3
      %p139 = por %p137, %p138
      %p140 = scmp.ne.s32.totalorder %s129, %s130
      %p141 = scmp.eq.s32.totalorder %s16, 0
      %p142 = por %p140, %p141
      %p143 = scmp.ne.s32.totalorder %s129, %s130
      %p144 = scmp.eq.s32.totalorder %s17, 3
      %p145 = por %p143, %p144
      %p147 = scmp.ne.s32.totalorder %s130, %s146
      %p148 = scmp.eq.s32.totalorder %s17, 0
      %p149 = por %p147, %p148
      %p150 = scmp.le.s32.totalorder 1, %s11
      %p151 = scmp.lt.s32.totalorder %s11, 5
      %p152 = pnand %p150, %p151
      %p153 = pneg %p152
      // Predicated region
      $region9: #{mlp_forward.1} parent=5 // pred_check
        _
      $region10: #{mlp_forward.1} parent=5 // pred_check_branch
        %155 = sbr.rel (%p152) target = $region12
      $region11: #{mlp_forward.1} parent=5 // pred_region
        %s156 = ssub.s32 %s11, 1
        // Predicated region
        $region13: #{mlp_forward.1} parent=11 // pred_check
          %p157 = pneg %p44
        $region14: #{mlp_forward.1} parent=11 // pred_check_branch
          %159 = sbr.rel (%p157) target = $region16
        $region15: #{mlp_forward.1} parent=11 // pred_region
          %s161 = ssub.s32 64, 64
          %162 = vsyncadd [#allocation3], %s161
          %s164 = sshll.u32 %s0, 4
          %s165 = int_to_ptr.vmem [resolvable:$true] %s164
          %167 = dma.vmem_to_smem %s165, 64, [#allocation2], [#allocation3]
        $region16: #{mlp_forward.1} parent=11 // pred_fallthru
          _
        // Predicated region
        $region17: #{mlp_forward.1} parent=11 // pred_check
          %p168 = pneg %p93
        $region18: #{mlp_forward.1} parent=11 // pred_check_branch
          %170 = sbr.rel (%p168) target = $region20
        $region19: #{mlp_forward.1} parent=11 // pred_region
          _
        $region20: #{mlp_forward.1} parent=11 // pred_fallthru
          _
        // Predicated region
        $region21: #{mlp_forward.1} parent=11 // pred_check
          %p171 = pneg %p114
        $region22: #{mlp_forward.1} parent=11 // pred_check_branch
          %173 = sbr.rel (%p171) target = $region24
        $region23: #{mlp_forward.1} parent=11 // pred_region
          _
        $region24: #{mlp_forward.1} parent=11 // pred_fallthru
          _
      $region12: #{mlp_forward.1} parent=5 // pred_fallthru
        _
      %p174 = scmp.lt.s32.totalorder %s11, 4
      // Predicated region
      $region25: #{mlp_forward.1} parent=5 // pred_check
        %p175 = pneg %p174
      $region26: #{mlp_forward.1} parent=5 // pred_check_branch
        %177 = sbr.rel (%p175) target = $region28
      $region27: #{mlp_forward.1} parent=5 // pred_region
        // Predicated region
        $region29: #{mlp_forward.1} parent=27 // pred_check
          %p178 = pneg %p66
        $region30: #{mlp_forward.1} parent=27 // pred_check_branch
          %180 = sbr.rel (%p178) target = $region32
        $region31: #{mlp_forward.1} parent=27 // pred_region
          %s181 = smul.u32 4, %s19
          %p182 = scmp.lt.s32.totalorder %s18, 3
          %s183 = scalar_select %p182, %s18, 3
          %p184 = scmp.lt.s32.totalorder %s181, 3
          %s185 = scalar_select %p184, %s181, 3
          %s186 = smul.addr %s183, 4
          %s187 = sadd.s32 %s185, %s186
          %s188 = smul.addr %s187, 8
          %s189 = scalar_lea.vmem %s1, %s188
          %s190 = smul.u32 4, %s19
        $region32: #{mlp_forward.1} parent=27 // pred_fallthru
          _
      $region28: #{mlp_forward.1} parent=5 // pred_fallthru
        _
      %p191 = scmp.le.s32.totalorder 1, %s11
      %p192 = scmp.lt.s32.totalorder %s11, 5
      %p193 = pnand %p191, %p192
      %p194 = pneg %p193
      // Predicated region
      $region33: #{mlp_forward.1} parent=5 // pred_check
        _
      $region34: #{mlp_forward.1} parent=5 // pred_check_branch
        %196 = sbr.rel (%p193) target = $region36
      $region35: #{mlp_forward.1} parent=5 // pred_region
        %s197 = ssub.s32 %s11, 1
        // Predicated region
        $region37: #{mlp_forward.1} parent=35 // pred_check
          %p198 = pneg %p44
        $region38: #{mlp_forward.1} parent=35 // pred_check_branch
          %200 = sbr.rel (%p198) target = $region40
        $region39: #{mlp_forward.1} parent=35 // pred_region
          %201 = dma.done [#allocation3], 64
        $region40: #{mlp_forward.1} parent=35 // pred_fallthru
          _
        %202 = sfence
        %p203 = pneg %p44
        %p204 = pneg %p41
        %s205 = smul.u32 4, %s21
        %p206 = scmp.lt.s32.totalorder %s20, 3
        %s207 = scalar_select %p206, %s20, 3
        %p208 = scmp.lt.s32.totalorder %s205, 3
        %s209 = scalar_select %p208, %s205, 3
        %s210 = smul.addr %s207, 4
        %s211 = sadd.s32 %s209, %s210
        %s212 = smul.addr %s211, 8
        %s213 = scalar_lea.vmem %s1, %s212
        %p214 = pneg %p72
        %p215 = pneg %p69
        %p216 = pneg %p93
        %p217 = pneg %p90
        %p218 = pneg %p114
        %p219 = pneg %p111
        %p220 = pneg %p142
        %p221 = pneg %p139
        %s222 = smul.u32 4, %s21
        %p223 = scmp.lt.s32.totalorder %s20, 3
        %s224 = scalar_select %p223, %s20, 3
        %p225 = scmp.lt.s32.totalorder %s222, 3
        %s226 = scalar_select %p225, %s222, 3
        %s227 = smul.addr %s224, 4
        %s228 = sadd.s32 %s226, %s227
        %s229 = smul.addr %s228, 4
        %s230 = scalar_lea.vmem %s4, %s229
        %s231 = smul.u32 4, %s21
        %p232 = scmp.lt.s32.totalorder %s20, 3
        %s233 = scalar_select %p232, %s20, 3
        %p234 = scmp.lt.s32.totalorder %s231, 3
        %s235 = scalar_select %p234, %s231, 3
        %s236 = smul.addr %s233, 4
        %s237 = sadd.s32 %s235, %s236
        %s238 = smul.addr %s237, 8
        %s239 = scalar_lea.vmem %s1, %s238
        %s240 = smul.u32 4, %s21
        %s241 = smul.u32 4, %s21
        %p242 = scmp.lt.s32.totalorder %s20, 3
        %s243 = scalar_select %p242, %s20, 3
        %p244 = scmp.lt.s32.totalorder %s241, 3
        %s245 = scalar_select %p244, %s241, 3
        %s246 = smul.addr %s243, 4
        %s247 = sadd.s32 %s245, %s246
        %s248 = smul.addr %s247, 4
        %s249 = scalar_lea.vmem %s4, %s248
        %s250 = smul.u32 4, %s21
        %v252 = vld [vmem:[%s239] sm:$0xff]
        %v253 = vld [vmem:[%s239 + $0x8] sm:$0xff]
        %v254 = vld [vmem:[%s239 + $0x10] sm:$0xff]
        %v255 = vld [vmem:[%s239 + $0x18] sm:$0xff]
        %v256 = vpack.c.bf16 %v252, %v252
        %v257 = vpack.c.bf16 %v253, %v253
        %v258 = vpack.c.bf16 %v254, %v254
        %v259 = vpack.c.bf16 %v255, %v255
        %v260 = vld [vmem:[%s2] sm:$0xf]
        %v261 = vld [vmem:[%s2 + $0x4] sm:$0xf]
        %v262 = vld [vmem:[%s2 + $0x8] sm:$0xf]
        %v263 = vld [vmem:[%s2 + $0xc] sm:$0xf]
        %v264 = vld [vmem:[%s3] sm:$0xff]
        %v265 = vld [vmem:[%s3 + $0x8] sm:$0xff]
        %v266 = vld [vmem:[%s3 + $0x10] sm:$0xff]
        %v267 = vld [vmem:[%s3 + $0x18] sm:$0xff]
        %269 = vset.pattern.permute.xlu0 0
        %270 = vperm.xlu0 %269, %v264
        %v271 = vpop.permute.xlu0 %270
        %274 = vset.pattern.permute.xlu0 0
        %275 = vperm.xlu0 %274, %v265
        %v276 = vpop.permute.xlu0 %275
        %279 = vset.pattern.permute.xlu0 0
        %280 = vperm.xlu0 %279, %v266
        %v281 = vpop.permute.xlu0 %280
        %284 = vset.pattern.permute.xlu0 0
        %285 = vperm.xlu0 %284, %v267
        %v286 = vpop.permute.xlu0 %285
        %v292 = vunpack.c.l.b16 %v260
        %v293 = vunpack.c.l.b16 %v261
        %v294 = vunpack.c.l.b16 %v262
        %v295 = vunpack.c.l.b16 %v263
        %v296 = vpack.c.b16 %v293, %v292
        %v297 = vpack.c.b16 %v295, %v294
        %vm298 = vcmask 64512
        %v300 = vsel %vm298, %v296, 0
        %v303 = vsel %vm298, %v297, 0
        %vm305 = vcmask 1043456
        %v307 = vsel %vm305, %v256, 0
        %v310 = vsel %vm305, %v257, 0
        %v313 = vsel %vm305, %v258, 0
        %v316 = vsel %vm305, %v259, 0
        %318 = vmatprep.subr.bf16.mxu0 0
        %319 = vmatpush1.bf16.msra.mxu0 0
        %320 = vmatprep.subr.bf16.mxu0 0
        %321 = vmatpush1.bf16.msra.mxu0 0
        %322 = vmatprep.subr.bf16.mxu0 0
        %323 = vmatpush1.bf16.msra.mxu0 0
        %324 = vmatprep.subr.bf16.mxu0 0
        %325 = vmatpush1.bf16.msra.mxu0 0
        %326 = vmatprep.subr.bf16.mxu0 0
        %327 = vmatpush1.bf16.msra.mxu0 0
        %328 = vmatprep.subr.bf16.mxu0 0
        %329 = vmatpush1.bf16.msra.mxu0 0
        %330 = vmatprep.subr.bf16.mxu0 0
        %331 = vmatpush1.bf16.msra.mxu0 0
        %332 = vmatprep.subr.bf16.mxu0 %v310
        %333 = vmatpush1.bf16.msra.mxu0 %v307
        %334 = vmatprep.subr.bf16.mxu0 0
        %335 = vmatpush2.bf16.msra.mxu0 0
        %336 = vmatprep.subr.bf16.mxu0 0
        %337 = vmatpush2.bf16.msra.mxu0 0
        %338 = vmatprep.subr.bf16.mxu0 0
        %339 = vmatpush2.bf16.msra.mxu0 0
        %340 = vmatprep.subr.bf16.mxu0 0
        %341 = vmatpush2.bf16.msra.mxu0 0
        %342 = vmatprep.subr.bf16.mxu0 0
        %343 = vmatpush2.bf16.msra.mxu0 0
        %344 = vmatprep.subr.bf16.mxu0 0
        %345 = vmatpush2.bf16.msra.mxu0 0
        %346 = vmatprep.subr.bf16.mxu0 0
        %347 = vmatpush2.bf16.msra.mxu0 0
        %348 = vmatprep.subr.bf16.mxu0 0
        %349 = vmatpush2.bf16.msra.mxu0 0
        %350 = vmatprep.mubr.bf16.mxu0 0
        %351 = vmatmul.mubr.bf16.gmra.mxu0 %v300
        %v352 = vpop.f32.mrf.mxu0
        %v353 = vadd.f32 %v271, %v352
        %v354 = vpop.f32.mrf.mxu0
        %v355 = vadd.f32 %v271, %v354
        %v356 = vpop.f32.mrf.mxu0
        %v357 = vadd.f32 %v276, %v356
        %v358 = vpop.f32.mrf.mxu0
        %v359 = vadd.f32 %v276, %v358
        %360 = vmatprep.mubr.bf16.mxu0 0
        %361 = vmatmul.mubr.bf16.gmra.mxu0 %v303
        %v362 = vpop.f32.mrf.mxu0
        %v363 = vadd.f32 %v281, %v362
        %v364 = vpop.f32.mrf.mxu0
        %v365 = vadd.f32 %v281, %v364
        %v366 = vpop.f32.mrf.mxu0
        %v367 = vadd.f32 %v286, %v366
        %v368 = vpop.f32.mrf.mxu0
        %v369 = vadd.f32 %v286, %v368
        %370 = vdwg.mxu0
        %371 = vmatprep.subr.bf16.mxu0 0
        %372 = vmatpush1.bf16.msra.mxu0 0
        %373 = vmatprep.subr.bf16.mxu0 0
        %374 = vmatpush1.bf16.msra.mxu0 0
        %375 = vmatprep.subr.bf16.mxu0 0
        %376 = vmatpush1.bf16.msra.mxu0 0
        %377 = vmatprep.subr.bf16.mxu0 0
        %378 = vmatpush1.bf16.msra.mxu0 0
        %379 = vmatprep.subr.bf16.mxu0 0
        %380 = vmatpush1.bf16.msra.mxu0 0
        %381 = vmatprep.subr.bf16.mxu0 0
        %382 = vmatpush1.bf16.msra.mxu0 0
        %383 = vmatprep.subr.bf16.mxu0 0
        %384 = vmatpush1.bf16.msra.mxu0 0
        %385 = vmatprep.subr.bf16.mxu0 %v316
        %386 = vmatpush1.bf16.msra.mxu0 %v313
        %387 = vmatprep.subr.bf16.mxu0 0
        %388 = vmatpush2.bf16.msra.mxu0 0
        %389 = vmatprep.subr.bf16.mxu0 0
        %390 = vmatpush2.bf16.msra.mxu0 0
        %391 = vmatprep.subr.bf16.mxu0 0
        %392 = vmatpush2.bf16.msra.mxu0 0
        %393 = vmatprep.subr.bf16.mxu0 0
        %394 = vmatpush2.bf16.msra.mxu0 0
        %395 = vmatprep.subr.bf16.mxu0 0
        %396 = vmatpush2.bf16.msra.mxu0 0
        %397 = vmatprep.subr.bf16.mxu0 0
        %398 = vmatpush2.bf16.msra.mxu0 0
        %399 = vmatprep.subr.bf16.mxu0 0
        %400 = vmatpush2.bf16.msra.mxu0 0
        %401 = vmatprep.subr.bf16.mxu0 0
        %402 = vmatpush2.bf16.msra.mxu0 0
        %403 = vmatprep.mubr.bf16.mxu0 0
        %404 = vmatmul.mubr.bf16.gmra.mxu0 %v300
        %v405 = vpop.f32.mrf.mxu0
        %v406 = vadd.f32 %v271, %v405
        %v407 = vpop.f32.mrf.mxu0
        %v408 = vadd.f32 %v271, %v407
        %v409 = vpop.f32.mrf.mxu0
        %v410 = vadd.f32 %v276, %v409
        %v411 = vpop.f32.mrf.mxu0
        %v412 = vadd.f32 %v276, %v411
        %413 = vmatprep.mubr.bf16.mxu0 0
        %414 = vmatmul.mubr.bf16.gmra.mxu0 %v303
        %v415 = vpop.f32.mrf.mxu0
        %v416 = vadd.f32 %v281, %v415
        %v417 = vpop.f32.mrf.mxu0
        %v418 = vadd.f32 %v281, %v417
        %v419 = vpop.f32.mrf.mxu0
        %v420 = vadd.f32 %v286, %v419
        %v421 = vpop.f32.mrf.mxu0
        %v422 = vadd.f32 %v286, %v421
        %423 = vdwg.mxu0
        %v424 = vmax.f32 %v353, 0.0
        %v425 = vmax.f32 %v355, 0.0
        %v426 = vmax.f32 %v406, 0.0
        %v427 = vmax.f32 %v408, 0.0
        %v428 = vmax.f32 %v357, 0.0
        %v429 = vmax.f32 %v359, 0.0
        %v430 = vmax.f32 %v410, 0.0
        %v431 = vmax.f32 %v412, 0.0
        %v432 = vmax.f32 %v363, 0.0
        %v433 = vmax.f32 %v365, 0.0
        %v434 = vmax.f32 %v416, 0.0
        %v435 = vmax.f32 %v418, 0.0
        %v436 = vmax.f32 %v367, 0.0
        %v437 = vmax.f32 %v369, 0.0
        %v438 = vmax.f32 %v420, 0.0
        %v439 = vmax.f32 %v422, 0.0
        %v440 = vpack.c.bf16 %v428, %v424
        %v441 = vpack.c.bf16 %v429, %v425
        %v442 = vpack.c.bf16 %v430, %v426
        %v443 = vpack.c.bf16 %v431, %v427
        %v444 = vpack.c.bf16 %v436, %v432
        %v445 = vpack.c.bf16 %v437, %v433
        %v446 = vpack.c.bf16 %v438, %v434
        %v447 = vpack.c.bf16 %v439, %v435
        %v448 = vld [vmem:[%s2 + $0x10] sm:$0xf]
        %v449 = vld [vmem:[%s2 + $0x14] sm:$0xf]
        %v450 = vld [vmem:[%s2 + $0x18] sm:$0xf]
        %v451 = vld [vmem:[%s2 + $0x1c] sm:$0xf]
        %v452 = vld [vmem:[%s3 + $0x20] sm:$0xff]
        %v453 = vld [vmem:[%s3 + $0x28] sm:$0xff]
        %v454 = vld [vmem:[%s3 + $0x30] sm:$0xff]
        %v455 = vld [vmem:[%s3 + $0x38] sm:$0xff]
        %457 = vset.pattern.permute.xlu0 0
        %458 = vperm.xlu0 %457, %v452
        %v459 = vpop.permute.xlu0 %458
        %462 = vset.pattern.permute.xlu0 0
        %463 = vperm.xlu0 %462, %v453
        %v464 = vpop.permute.xlu0 %463
        %467 = vset.pattern.permute.xlu0 0
        %468 = vperm.xlu0 %467, %v454
        %v469 = vpop.permute.xlu0 %468
        %472 = vset.pattern.permute.xlu0 0
        %473 = vperm.xlu0 %472, %v455
        %v474 = vpop.permute.xlu0 %473
        %v480 = vunpack.c.l.b16 %v448
        %v481 = vunpack.c.l.b16 %v449
        %v482 = vunpack.c.l.b16 %v450
        %v483 = vunpack.c.l.b16 %v451
        %v484 = vpack.c.b16 %v481, %v480
        %v485 = vpack.c.b16 %v483, %v482
        %vm486 = vcmask 261120
        %v488 = vsel %vm486, %v484, 0
        %v491 = vsel %vm486, %v485, 0
        %493 = vmatprep.subr.bf16.mxu0 0
        %494 = vmatpush1.bf16.msra.mxu0 0
        %495 = vmatprep.subr.bf16.mxu0 0
        %496 = vmatpush1.bf16.msra.mxu0 0
        %497 = vmatprep.subr.bf16.mxu0 0
        %498 = vmatpush1.bf16.msra.mxu0 0
        %499 = vmatprep.subr.bf16.mxu0 0
        %500 = vmatpush1.bf16.msra.mxu0 0
        %501 = vmatprep.subr.bf16.mxu0 0
        %502 = vmatpush1.bf16.msra.mxu0 0
        %503 = vmatprep.subr.bf16.mxu0 0
        %504 = vmatpush1.bf16.msra.mxu0 0
        %505 = vmatprep.subr.bf16.mxu0 %v445
        %506 = vmatpush1.bf16.msra.mxu0 %v444
        %507 = vmatprep.subr.bf16.mxu0 %v441
        %508 = vmatpush1.bf16.msra.mxu0 %v440
        %509 = vmatprep.subr.bf16.mxu0 0
        %510 = vmatpush2.bf16.msra.mxu0 0
        %511 = vmatprep.subr.bf16.mxu0 0
        %512 = vmatpush2.bf16.msra.mxu0 0
        %513 = vmatprep.subr.bf16.mxu0 0
        %514 = vmatpush2.bf16.msra.mxu0 0
        %515 = vmatprep.subr.bf16.mxu0 0
        %516 = vmatpush2.bf16.msra.mxu0 0
        %517 = vmatprep.subr.bf16.mxu0 0
        %518 = vmatpush2.bf16.msra.mxu0 0
        %519 = vmatprep.subr.bf16.mxu0 0
        %520 = vmatpush2.bf16.msra.mxu0 0
        %521 = vmatprep.subr.bf16.mxu0 0
        %522 = vmatpush2.bf16.msra.mxu0 0
        %523 = vmatprep.subr.bf16.mxu0 0
        %524 = vmatpush2.bf16.msra.mxu0 0
        %525 = vmatprep.mubr.bf16.mxu0 0
        %526 = vmatmul.mubr.bf16.gmra.mxu0 %v488
        %v527 = vpop.f32.mrf.mxu0
        %v528 = vadd.f32 %v459, %v527
        %v529 = vpop.f32.mrf.mxu0
        %v530 = vadd.f32 %v459, %v529
        %v531 = vpop.f32.mrf.mxu0
        %v532 = vadd.f32 %v464, %v531
        %v533 = vpop.f32.mrf.mxu0
        %v534 = vadd.f32 %v464, %v533
        %535 = vmatprep.mubr.bf16.mxu0 0
        %536 = vmatmul.mubr.bf16.gmra.mxu0 %v491
        %v537 = vpop.f32.mrf.mxu0
        %v538 = vadd.f32 %v469, %v537
        %v539 = vpop.f32.mrf.mxu0
        %v540 = vadd.f32 %v469, %v539
        %v541 = vpop.f32.mrf.mxu0
        %v542 = vadd.f32 %v474, %v541
        %v543 = vpop.f32.mrf.mxu0
        %v544 = vadd.f32 %v474, %v543
        %545 = vdwg.mxu0
        %546 = vmatprep.subr.bf16.mxu0 0
        %547 = vmatpush1.bf16.msra.mxu0 0
        %548 = vmatprep.subr.bf16.mxu0 0
        %549 = vmatpush1.bf16.msra.mxu0 0
        %550 = vmatprep.subr.bf16.mxu0 0
        %551 = vmatpush1.bf16.msra.mxu0 0
        %552 = vmatprep.subr.bf16.mxu0 0
        %553 = vmatpush1.bf16.msra.mxu0 0
        %554 = vmatprep.subr.bf16.mxu0 0
        %555 = vmatpush1.bf16.msra.mxu0 0
        %556 = vmatprep.subr.bf16.mxu0 0
        %557 = vmatpush1.bf16.msra.mxu0 0
        %558 = vmatprep.subr.bf16.mxu0 %v447
        %559 = vmatpush1.bf16.msra.mxu0 %v446
        %560 = vmatprep.subr.bf16.mxu0 %v443
        %561 = vmatpush1.bf16.msra.mxu0 %v442
        %562 = vmatprep.subr.bf16.mxu0 0
        %563 = vmatpush2.bf16.msra.mxu0 0
        %564 = vmatprep.subr.bf16.mxu0 0
        %565 = vmatpush2.bf16.msra.mxu0 0
        %566 = vmatprep.subr.bf16.mxu0 0
        %567 = vmatpush2.bf16.msra.mxu0 0
        %568 = vmatprep.subr.bf16.mxu0 0
        %569 = vmatpush2.bf16.msra.mxu0 0
        %570 = vmatprep.subr.bf16.mxu0 0
        %571 = vmatpush2.bf16.msra.mxu0 0
        %572 = vmatprep.subr.bf16.mxu0 0
        %573 = vmatpush2.bf16.msra.mxu0 0
        %574 = vmatprep.subr.bf16.mxu0 0
        %575 = vmatpush2.bf16.msra.mxu0 0
        %576 = vmatprep.subr.bf16.mxu0 0
        %577 = vmatpush2.bf16.msra.mxu0 0
        %578 = vmatprep.mubr.bf16.mxu0 0
        %579 = vmatmul.mubr.bf16.gmra.mxu0 %v488
        %v580 = vpop.f32.mrf.mxu0
        %v581 = vadd.f32 %v459, %v580
        %v582 = vpop.f32.mrf.mxu0
        %v583 = vadd.f32 %v459, %v582
        %v584 = vpop.f32.mrf.mxu0
        %v585 = vadd.f32 %v464, %v584
        %v586 = vpop.f32.mrf.mxu0
        %v587 = vadd.f32 %v464, %v586
        %588 = vmatprep.mubr.bf16.mxu0 0
        %589 = vmatmul.mubr.bf16.gmra.mxu0 %v491
        %v590 = vpop.f32.mrf.mxu0
        %v591 = vadd.f32 %v469, %v590
        %v592 = vpop.f32.mrf.mxu0
        %v593 = vadd.f32 %v469, %v592
        %v594 = vpop.f32.mrf.mxu0
        %v595 = vadd.f32 %v474, %v594
        %v596 = vpop.f32.mrf.mxu0
        %v597 = vadd.f32 %v474, %v596
        %598 = vdwg.mxu0
        %v599 = vmax.f32 %v528, 0.0
        %v600 = vmax.f32 %v530, 0.0
        %v601 = vmax.f32 %v581, 0.0
        %v602 = vmax.f32 %v583, 0.0
        %v603 = vmax.f32 %v532, 0.0
        %v604 = vmax.f32 %v534, 0.0
        %v605 = vmax.f32 %v585, 0.0
        %v606 = vmax.f32 %v587, 0.0
        %v607 = vmax.f32 %v538, 0.0
        %v608 = vmax.f32 %v540, 0.0
        %v609 = vmax.f32 %v591, 0.0
        %v610 = vmax.f32 %v593, 0.0
        %v611 = vmax.f32 %v542, 0.0
        %v612 = vmax.f32 %v544, 0.0
        %v613 = vmax.f32 %v595, 0.0
        %v614 = vmax.f32 %v597, 0.0
        %v615 = vpack.c.bf16 %v603, %v599
        %v616 = vpack.c.bf16 %v604, %v600
        %v617 = vpack.c.bf16 %v605, %v601
        %v618 = vpack.c.bf16 %v606, %v602
        %v619 = vpack.c.bf16 %v611, %v607
        %v620 = vpack.c.bf16 %v612, %v608
        %v621 = vpack.c.bf16 %v613, %v609
        %v622 = vpack.c.bf16 %v614, %v610
        %v623 = vld [vmem:[%s2 + $0x20] sm:$0xf]
        %v624 = vld [vmem:[%s2 + $0x24] sm:$0xf]
        %v625 = vld [vmem:[%s2 + $0x28] sm:$0xf]
        %v626 = vld [vmem:[%s2 + $0x2c] sm:$0xf]
        %v627 = vld [vmem:[%s3 + $0x40] sm:$0xff]
        %v628 = vld [vmem:[%s3 + $0x48] sm:$0xff]
        %v629 = vld [vmem:[%s3 + $0x50] sm:$0xff]
        %v630 = vld [vmem:[%s3 + $0x58] sm:$0xff]
        %632 = vset.pattern.permute.xlu0 0
        %633 = vperm.xlu0 %632, %v627
        %v634 = vpop.permute.xlu0 %633
        %637 = vset.pattern.permute.xlu0 0
        %638 = vperm.xlu0 %637, %v628
        %v639 = vpop.permute.xlu0 %638
        %642 = vset.pattern.permute.xlu0 0
        %643 = vperm.xlu0 %642, %v629
        %v644 = vpop.permute.xlu0 %643
        %647 = vset.pattern.permute.xlu0 0
        %648 = vperm.xlu0 %647, %v630
        %v649 = vpop.permute.xlu0 %648
        %v655 = vunpack.c.l.b16 %v623
        %v656 = vunpack.c.l.b16 %v624
        %v657 = vunpack.c.l.b16 %v625
        %v658 = vunpack.c.l.b16 %v626
        %v659 = vpack.c.b16 %v656, %v655
        %v660 = vpack.c.b16 %v658, %v657
        %v662 = vsel %vm486, %v659, 0
        %v665 = vsel %vm486, %v660, 0
        %667 = vmatprep.subr.bf16.mxu0 0
        %668 = vmatpush1.bf16.msra.mxu0 0
        %669 = vmatprep.subr.bf16.mxu0 0
        %670 = vmatpush1.bf16.msra.mxu0 0
        %671 = vmatprep.subr.bf16.mxu0 0
        %672 = vmatpush1.bf16.msra.mxu0 0
        %673 = vmatprep.subr.bf16.mxu0 0
        %674 = vmatpush1.bf16.msra.mxu0 0
        %675 = vmatprep.subr.bf16.mxu0 0
        %676 = vmatpush1.bf16.msra.mxu0 0
        %677 = vmatprep.subr.bf16.mxu0 0
        %678 = vmatpush1.bf16.msra.mxu0 0
        %679 = vmatprep.subr.bf16.mxu0 %v620
        %680 = vmatpush1.bf16.msra.mxu0 %v619
        %681 = vmatprep.subr.bf16.mxu0 %v616
        %682 = vmatpush1.bf16.msra.mxu0 %v615
        %683 = vmatprep.subr.bf16.mxu0 0
        %684 = vmatpush2.bf16.msra.mxu0 0
        %685 = vmatprep.subr.bf16.mxu0 0
        %686 = vmatpush2.bf16.msra.mxu0 0
        %687 = vmatprep.subr.bf16.mxu0 0
        %688 = vmatpush2.bf16.msra.mxu0 0
        %689 = vmatprep.subr.bf16.mxu0 0
        %690 = vmatpush2.bf16.msra.mxu0 0
        %691 = vmatprep.subr.bf16.mxu0 0
        %692 = vmatpush2.bf16.msra.mxu0 0
        %693 = vmatprep.subr.bf16.mxu0 0
        %694 = vmatpush2.bf16.msra.mxu0 0
        %695 = vmatprep.subr.bf16.mxu0 0
        %696 = vmatpush2.bf16.msra.mxu0 0
        %697 = vmatprep.subr.bf16.mxu0 0
        %698 = vmatpush2.bf16.msra.mxu0 0
        %699 = vmatprep.mubr.bf16.mxu0 0
        %700 = vmatmul.mubr.bf16.gmra.mxu0 %v662
        %v701 = vpop.f32.mrf.mxu0
        %v702 = vadd.f32 %v634, %v701
        %v703 = vpop.f32.mrf.mxu0
        %v704 = vadd.f32 %v634, %v703
        %v705 = vpop.f32.mrf.mxu0
        %v706 = vadd.f32 %v639, %v705
        %v707 = vpop.f32.mrf.mxu0
        %v708 = vadd.f32 %v639, %v707
        %709 = vmatprep.mubr.bf16.mxu0 0
        %710 = vmatmul.mubr.bf16.gmra.mxu0 %v665
        %v711 = vpop.f32.mrf.mxu0
        %v712 = vadd.f32 %v644, %v711
        %v713 = vpop.f32.mrf.mxu0
        %v714 = vadd.f32 %v644, %v713
        %v715 = vpop.f32.mrf.mxu0
        %v716 = vadd.f32 %v649, %v715
        %v717 = vpop.f32.mrf.mxu0
        %v718 = vadd.f32 %v649, %v717
        %719 = vdwg.mxu0
        %720 = vmatprep.subr.bf16.mxu0 0
        %721 = vmatpush1.bf16.msra.mxu0 0
        %722 = vmatprep.subr.bf16.mxu0 0
        %723 = vmatpush1.bf16.msra.mxu0 0
        %724 = vmatprep.subr.bf16.mxu0 0
        %725 = vmatpush1.bf16.msra.mxu0 0
        %726 = vmatprep.subr.bf16.mxu0 0
        %727 = vmatpush1.bf16.msra.mxu0 0
        %728 = vmatprep.subr.bf16.mxu0 0
        %729 = vmatpush1.bf16.msra.mxu0 0
        %730 = vmatprep.subr.bf16.mxu0 0
        %731 = vmatpush1.bf16.msra.mxu0 0
        %732 = vmatprep.subr.bf16.mxu0 %v622
        %733 = vmatpush1.bf16.msra.mxu0 %v621
        %734 = vmatprep.subr.bf16.mxu0 %v618
        %735 = vmatpush1.bf16.msra.mxu0 %v617
        %736 = vmatprep.subr.bf16.mxu0 0
        %737 = vmatpush2.bf16.msra.mxu0 0
        %738 = vmatprep.subr.bf16.mxu0 0
        %739 = vmatpush2.bf16.msra.mxu0 0
        %740 = vmatprep.subr.bf16.mxu0 0
        %741 = vmatpush2.bf16.msra.mxu0 0
        %742 = vmatprep.subr.bf16.mxu0 0
        %743 = vmatpush2.bf16.msra.mxu0 0
        %744 = vmatprep.subr.bf16.mxu0 0
        %745 = vmatpush2.bf16.msra.mxu0 0
        %746 = vmatprep.subr.bf16.mxu0 0
        %747 = vmatpush2.bf16.msra.mxu0 0
        %748 = vmatprep.subr.bf16.mxu0 0
        %749 = vmatpush2.bf16.msra.mxu0 0
        %750 = vmatprep.subr.bf16.mxu0 0
        %751 = vmatpush2.bf16.msra.mxu0 0
        %752 = vmatprep.mubr.bf16.mxu0 0
        %753 = vmatmul.mubr.bf16.gmra.mxu0 %v662
        %v754 = vpop.f32.mrf.mxu0
        %v755 = vadd.f32 %v634, %v754
        %v756 = vpop.f32.mrf.mxu0
        %v757 = vadd.f32 %v634, %v756
        %v758 = vpop.f32.mrf.mxu0
        %v759 = vadd.f32 %v639, %v758
        %v760 = vpop.f32.mrf.mxu0
        %v761 = vadd.f32 %v639, %v760
        %762 = vmatprep.mubr.bf16.mxu0 0
        %763 = vmatmul.mubr.bf16.gmra.mxu0 %v665
        %v764 = vpop.f32.mrf.mxu0
        %v765 = vadd.f32 %v644, %v764
        %v766 = vpop.f32.mrf.mxu0
        %v767 = vadd.f32 %v644, %v766
        %v768 = vpop.f32.mrf.mxu0
        %v769 = vadd.f32 %v649, %v768
        %v770 = vpop.f32.mrf.mxu0
        %v771 = vadd.f32 %v649, %v770
        %772 = vdwg.mxu0
        %v773 = vmax.f32 %v702, 0.0
        %v774 = vmax.f32 %v704, 0.0
        %v775 = vmax.f32 %v755, 0.0
        %v776 = vmax.f32 %v757, 0.0
        %v777 = vmax.f32 %v706, 0.0
        %v778 = vmax.f32 %v708, 0.0
        %v779 = vmax.f32 %v759, 0.0
        %v780 = vmax.f32 %v761, 0.0
        %v781 = vmax.f32 %v712, 0.0
        %v782 = vmax.f32 %v714, 0.0
        %v783 = vmax.f32 %v765, 0.0
        %v784 = vmax.f32 %v767, 0.0
        %v785 = vmax.f32 %v716, 0.0
        %v786 = vmax.f32 %v718, 0.0
        %v787 = vmax.f32 %v769, 0.0
        %v788 = vmax.f32 %v771, 0.0
        %v789 = vpack.c.bf16 %v777, %v773
        %v790 = vpack.c.bf16 %v778, %v774
        %v791 = vpack.c.bf16 %v779, %v775
        %v792 = vpack.c.bf16 %v780, %v776
        %v793 = vpack.c.bf16 %v785, %v781
        %v794 = vpack.c.bf16 %v786, %v782
        %v795 = vpack.c.bf16 %v787, %v783
        %v796 = vpack.c.bf16 %v788, %v784
        %v797 = vld [vmem:[%s2 + $0x30] sm:$0xf]
        %v798 = vld [vmem:[%s2 + $0x34] sm:$0xf]
        %v799 = vld [vmem:[%s2 + $0x38] sm:$0xf]
        %v800 = vld [vmem:[%s2 + $0x3c] sm:$0xf]
        %v805 = vunpack.c.l.b16 %v797
        %v806 = vunpack.c.l.b16 %v798
        %v807 = vunpack.c.l.b16 %v799
        %v808 = vunpack.c.l.b16 %v800
        %v809 = vpack.c.b16 %v806, %v805
        %v810 = vpack.c.b16 %v808, %v807
        %811 = vrot.lane.b32.xlu0 %v809, 96
        %v812 = vpop.permute.xlu0 %811
        %813 = vrot.lane.b32.xlu0 %v810, 96
        %v814 = vpop.permute.xlu0 %813
        %v816 = vsel %vm298, %v812, 0
        %v819 = vsel %vm298, %v814, 0
        %821 = vmatprep.subr.bf16.mxu0 0
        %822 = vmatpush1.bf16.msra.mxu0 0
        %823 = vmatprep.subr.bf16.mxu0 0
        %824 = vmatpush1.bf16.msra.mxu0 0
        %825 = vmatprep.subr.bf16.mxu0 0
        %826 = vmatpush1.bf16.msra.mxu0 0
        %827 = vmatprep.subr.bf16.mxu0 0
        %828 = vmatpush1.bf16.msra.mxu0 0
        %829 = vmatprep.subr.bf16.mxu0 0
        %830 = vmatpush1.bf16.msra.mxu0 0
        %831 = vmatprep.subr.bf16.mxu0 0
        %832 = vmatpush1.bf16.msra.mxu0 0
        %833 = vmatprep.subr.bf16.mxu0 0
        %834 = vmatpush1.bf16.msra.mxu0 0
        %835 = vmatprep.subr.bf16.mxu0 %v310
        %836 = vmatpush1.bf16.msra.mxu0 %v307
        %837 = vmatprep.subr.bf16.mxu0 0
        %838 = vmatpush2.bf16.msra.mxu0 0
        %839 = vmatprep.subr.bf16.mxu0 0
        %840 = vmatpush2.bf16.msra.mxu0 0
        %841 = vmatprep.subr.bf16.mxu0 0
        %842 = vmatpush2.bf16.msra.mxu0 0
        %843 = vmatprep.subr.bf16.mxu0 0
        %844 = vmatpush2.bf16.msra.mxu0 0
        %845 = vmatprep.subr.bf16.mxu0 0
        %846 = vmatpush2.bf16.msra.mxu0 0
        %847 = vmatprep.subr.bf16.mxu0 0
        %848 = vmatpush2.bf16.msra.mxu0 0
        %849 = vmatprep.subr.bf16.mxu0 0
        %850 = vmatpush2.bf16.msra.mxu0 0
        %851 = vmatprep.subr.bf16.mxu0 0
        %852 = vmatpush2.bf16.msra.mxu0 0
        %853 = vmatprep.mubr.bf16.mxu0 0
        %854 = vmatmul.mubr.bf16.gmra.mxu0 %v816
        %v855 = vpop.f32.mrf.mxu0
        %v856 = vadd.f32 0.0, %v855
        %v857 = vpop.f32.mrf.mxu0
        %v858 = vadd.f32 0.0, %v857
        %v859 = vpop.f32.mrf.mxu0
        %v860 = vadd.f32 0.0, %v859
        %v861 = vpop.f32.mrf.mxu0
        %v862 = vadd.f32 0.0, %v861
        %863 = vmatprep.mubr.bf16.mxu0 0
        %864 = vmatmul.mubr.bf16.gmra.mxu0 %v819
        %v865 = vpop.f32.mrf.mxu0
        %v866 = vadd.f32 0.0, %v865
        %v867 = vpop.f32.mrf.mxu0
        %v868 = vadd.f32 0.0, %v867
        %v869 = vpop.f32.mrf.mxu0
        %v870 = vadd.f32 0.0, %v869
        %v871 = vpop.f32.mrf.mxu0
        %v872 = vadd.f32 0.0, %v871
        %873 = vdwg.mxu0
        %874 = vmatprep.subr.bf16.mxu0 0
        %875 = vmatpush1.bf16.msra.mxu0 0
        %876 = vmatprep.subr.bf16.mxu0 0
        %877 = vmatpush1.bf16.msra.mxu0 0
        %878 = vmatprep.subr.bf16.mxu0 0
        %879 = vmatpush1.bf16.msra.mxu0 0
        %880 = vmatprep.subr.bf16.mxu0 0
        %881 = vmatpush1.bf16.msra.mxu0 0
        %882 = vmatprep.subr.bf16.mxu0 0
        %883 = vmatpush1.bf16.msra.mxu0 0
        %884 = vmatprep.subr.bf16.mxu0 0
        %885 = vmatpush1.bf16.msra.mxu0 0
        %886 = vmatprep.subr.bf16.mxu0 0
        %887 = vmatpush1.bf16.msra.mxu0 0
        %888 = vmatprep.subr.bf16.mxu0 %v316
        %889 = vmatpush1.bf16.msra.mxu0 %v313
        %890 = vmatprep.subr.bf16.mxu0 0
        %891 = vmatpush2.bf16.msra.mxu0 0
        %892 = vmatprep.subr.bf16.mxu0 0
        %893 = vmatpush2.bf16.msra.mxu0 0
        %894 = vmatprep.subr.bf16.mxu0 0
        %895 = vmatpush2.bf16.msra.mxu0 0
        %896 = vmatprep.subr.bf16.mxu0 0
        %897 = vmatpush2.bf16.msra.mxu0 0
        %898 = vmatprep.subr.bf16.mxu0 0
        %899 = vmatpush2.bf16.msra.mxu0 0
        %900 = vmatprep.subr.bf16.mxu0 0
        %901 = vmatpush2.bf16.msra.mxu0 0
        %902 = vmatprep.subr.bf16.mxu0 0
        %903 = vmatpush2.bf16.msra.mxu0 0
        %904 = vmatprep.subr.bf16.mxu0 0
        %905 = vmatpush2.bf16.msra.mxu0 0
        %906 = vmatprep.mubr.bf16.mxu0 0
        %907 = vmatmul.mubr.bf16.gmra.mxu0 %v816
        %v908 = vpop.f32.mrf.mxu0
        %v909 = vadd.f32 0.0, %v908
        %v910 = vpop.f32.mrf.mxu0
        %v911 = vadd.f32 0.0, %v910
        %v912 = vpop.f32.mrf.mxu0
        %v913 = vadd.f32 0.0, %v912
        %v914 = vpop.f32.mrf.mxu0
        %v915 = vadd.f32 0.0, %v914
        %916 = vmatprep.mubr.bf16.mxu0 0
        %917 = vmatmul.mubr.bf16.gmra.mxu0 %v819
        %v918 = vpop.f32.mrf.mxu0
        %v919 = vadd.f32 0.0, %v918
        %v920 = vpop.f32.mrf.mxu0
        %v921 = vadd.f32 0.0, %v920
        %v922 = vpop.f32.mrf.mxu0
        %v923 = vadd.f32 0.0, %v922
        %v924 = vpop.f32.mrf.mxu0
        %v925 = vadd.f32 0.0, %v924
        %926 = vdwg.mxu0
        %v928 = vsel %vm486, %v809, 0
        %v931 = vsel %vm486, %v810, 0
        %933 = vmatprep.subr.bf16.mxu0 0
        %934 = vmatpush1.bf16.msra.mxu0 0
        %935 = vmatprep.subr.bf16.mxu0 0
        %936 = vmatpush1.bf16.msra.mxu0 0
        %937 = vmatprep.subr.bf16.mxu0 0
        %938 = vmatpush1.bf16.msra.mxu0 0
        %939 = vmatprep.subr.bf16.mxu0 0
        %940 = vmatpush1.bf16.msra.mxu0 0
        %941 = vmatprep.subr.bf16.mxu0 0
        %942 = vmatpush1.bf16.msra.mxu0 0
        %943 = vmatprep.subr.bf16.mxu0 0
        %944 = vmatpush1.bf16.msra.mxu0 0
        %945 = vmatprep.subr.bf16.mxu0 %v794
        %946 = vmatpush1.bf16.msra.mxu0 %v793
        %947 = vmatprep.subr.bf16.mxu0 %v790
        %948 = vmatpush1.bf16.msra.mxu0 %v789
        %949 = vmatprep.subr.bf16.mxu0 0
        %950 = vmatpush2.bf16.msra.mxu0 0
        %951 = vmatprep.subr.bf16.mxu0 0
        %952 = vmatpush2.bf16.msra.mxu0 0
        %953 = vmatprep.subr.bf16.mxu0 0
        %954 = vmatpush2.bf16.msra.mxu0 0
        %955 = vmatprep.subr.bf16.mxu0 0
        %956 = vmatpush2.bf16.msra.mxu0 0
        %957 = vmatprep.subr.bf16.mxu0 0
        %958 = vmatpush2.bf16.msra.mxu0 0
        %959 = vmatprep.subr.bf16.mxu0 0
        %960 = vmatpush2.bf16.msra.mxu0 0
        %961 = vmatprep.subr.bf16.mxu0 0
        %962 = vmatpush2.bf16.msra.mxu0 0
        %963 = vmatprep.subr.bf16.mxu0 0
        %964 = vmatpush2.bf16.msra.mxu0 0
        %965 = vmatprep.mubr.bf16.mxu0 0
        %966 = vmatmul.mubr.bf16.gmra.mxu0 %v928
        %v967 = vpop.f32.mrf.mxu0
        %v968 = vadd.f32 %v856, %v967
        %v969 = vpop.f32.mrf.mxu0
        %v970 = vadd.f32 %v858, %v969
        %v971 = vpop.f32.mrf.mxu0
        %v972 = vadd.f32 %v860, %v971
        %v973 = vpop.f32.mrf.mxu0
        %v974 = vadd.f32 %v862, %v973
        %975 = vmatprep.mubr.bf16.mxu0 0
        %976 = vmatmul.mubr.bf16.gmra.mxu0 %v931
        %v977 = vpop.f32.mrf.mxu0
        %v978 = vadd.f32 %v866, %v977
        %v979 = vpop.f32.mrf.mxu0
        %v980 = vadd.f32 %v868, %v979
        %v981 = vpop.f32.mrf.mxu0
        %v982 = vadd.f32 %v870, %v981
        %v983 = vpop.f32.mrf.mxu0
        %v984 = vadd.f32 %v872, %v983
        %985 = vdwg.mxu0
        %986 = vmatprep.subr.bf16.mxu0 0
        %987 = vmatpush1.bf16.msra.mxu0 0
        %988 = vmatprep.subr.bf16.mxu0 0
        %989 = vmatpush1.bf16.msra.mxu0 0
        %990 = vmatprep.subr.bf16.mxu0 0
        %991 = vmatpush1.bf16.msra.mxu0 0
        %992 = vmatprep.subr.bf16.mxu0 0
        %993 = vmatpush1.bf16.msra.mxu0 0
        %994 = vmatprep.subr.bf16.mxu0 0
        %995 = vmatpush1.bf16.msra.mxu0 0
        %996 = vmatprep.subr.bf16.mxu0 0
        %997 = vmatpush1.bf16.msra.mxu0 0
        %998 = vmatprep.subr.bf16.mxu0 %v796
        %999 = vmatpush1.bf16.msra.mxu0 %v795
        %1000 = vmatprep.subr.bf16.mxu0 %v792
        %1001 = vmatpush1.bf16.msra.mxu0 %v791
        %1002 = vmatprep.subr.bf16.mxu0 0
        %1003 = vmatpush2.bf16.msra.mxu0 0
        %1004 = vmatprep.subr.bf16.mxu0 0
        %1005 = vmatpush2.bf16.msra.mxu0 0
        %1006 = vmatprep.subr.bf16.mxu0 0
        %1007 = vmatpush2.bf16.msra.mxu0 0
        %1008 = vmatprep.subr.bf16.mxu0 0
        %1009 = vmatpush2.bf16.msra.mxu0 0
        %1010 = vmatprep.subr.bf16.mxu0 0
        %1011 = vmatpush2.bf16.msra.mxu0 0
        %1012 = vmatprep.subr.bf16.mxu0 0
        %1013 = vmatpush2.bf16.msra.mxu0 0
        %1014 = vmatprep.subr.bf16.mxu0 0
        %1015 = vmatpush2.bf16.msra.mxu0 0
        %1016 = vmatprep.subr.bf16.mxu0 0
        %1017 = vmatpush2.bf16.msra.mxu0 0
        %1018 = vmatprep.mubr.bf16.mxu0 0
        %1019 = vmatmul.mubr.bf16.gmra.mxu0 %v928
        %v1020 = vpop.f32.mrf.mxu0
        %v1021 = vadd.f32 %v909, %v1020
        %v1022 = vpop.f32.mrf.mxu0
        %v1023 = vadd.f32 %v911, %v1022
        %v1024 = vpop.f32.mrf.mxu0
        %v1025 = vadd.f32 %v913, %v1024
        %v1026 = vpop.f32.mrf.mxu0
        %v1027 = vadd.f32 %v915, %v1026
        %1028 = vmatprep.mubr.bf16.mxu0 0
        %1029 = vmatmul.mubr.bf16.gmra.mxu0 %v931
        %v1030 = vpop.f32.mrf.mxu0
        %v1031 = vadd.f32 %v919, %v1030
        %v1032 = vpop.f32.mrf.mxu0
        %v1033 = vadd.f32 %v921, %v1032
        %v1034 = vpop.f32.mrf.mxu0
        %v1035 = vadd.f32 %v923, %v1034
        %v1036 = vpop.f32.mrf.mxu0
        %v1037 = vadd.f32 %v925, %v1036
        %1038 = vdwg.mxu0
        %v1039 = vld [vmem:[%s3 + $0x60] sm:$0xff]
        %v1040 = vld [vmem:[%s3 + $0x68] sm:$0xff]
        %v1041 = vld [vmem:[%s3 + $0x70] sm:$0xff]
        %v1042 = vld [vmem:[%s3 + $0x78] sm:$0xff]
        %1044 = vset.pattern.permute.xlu0 0
        %1045 = vperm.xlu0 %1044, %v1039
        %v1046 = vpop.permute.xlu0 %1045
        %1049 = vset.pattern.permute.xlu0 0
        %1050 = vperm.xlu0 %1049, %v1040
        %v1051 = vpop.permute.xlu0 %1050
        %1054 = vset.pattern.permute.xlu0 0
        %1055 = vperm.xlu0 %1054, %v1041
        %v1056 = vpop.permute.xlu0 %1055
        %1059 = vset.pattern.permute.xlu0 0
        %1060 = vperm.xlu0 %1059, %v1042
        %v1061 = vpop.permute.xlu0 %1060
        %v1063 = vadd.f32 %v968, %v1046
        %v1064 = vadd.f32 %v970, %v1046
        %v1065 = vadd.f32 %v1021, %v1046
        %v1066 = vadd.f32 %v1023, %v1046
        %v1067 = vadd.f32 %v972, %v1051
        %v1068 = vadd.f32 %v974, %v1051
        %v1069 = vadd.f32 %v1025, %v1051
        %v1070 = vadd.f32 %v1027, %v1051
        %v1071 = vadd.f32 %v978, %v1056
        %v1072 = vadd.f32 %v980, %v1056
        %v1073 = vadd.f32 %v1031, %v1056
        %v1074 = vadd.f32 %v1033, %v1056
        %v1075 = vadd.f32 %v982, %v1061
        %v1076 = vadd.f32 %v984, %v1061
        %v1077 = vadd.f32 %v1035, %v1061
        %v1078 = vadd.f32 %v1037, %v1061
        %v1079 = vmax.f32 %v1063, 0.0
        %v1080 = vmax.f32 %v1064, 0.0
        %v1081 = vmax.f32 %v1065, 0.0
        %v1082 = vmax.f32 %v1066, 0.0
        %v1083 = vmax.f32 %v1067, 0.0
        %v1084 = vmax.f32 %v1068, 0.0
        %v1085 = vmax.f32 %v1069, 0.0
        %v1086 = vmax.f32 %v1070, 0.0
        %v1087 = vmax.f32 %v1071, 0.0
        %v1088 = vmax.f32 %v1072, 0.0
        %v1089 = vmax.f32 %v1073, 0.0
        %v1090 = vmax.f32 %v1074, 0.0
        %v1091 = vmax.f32 %v1075, 0.0
        %v1092 = vmax.f32 %v1076, 0.0
        %v1093 = vmax.f32 %v1077, 0.0
        %v1094 = vmax.f32 %v1078, 0.0
        %v1095 = vpack.c.bf16 %v1083, %v1079
        %v1096 = vpack.c.bf16 %v1084, %v1080
        %v1097 = vpack.c.bf16 %v1085, %v1081
        %v1098 = vpack.c.bf16 %v1086, %v1082
        %v1099 = vpack.c.bf16 %v1091, %v1087
        %v1100 = vpack.c.bf16 %v1092, %v1088
        %v1101 = vpack.c.bf16 %v1093, %v1089
        %v1102 = vpack.c.bf16 %v1094, %v1090
        %v1103 = vld [vmem:[%s2 + $0x40] sm:$0xf]
        %v1104 = vld [vmem:[%s2 + $0x44] sm:$0xf]
        %v1105 = vld [vmem:[%s2 + $0x48] sm:$0xf]
        %v1106 = vld [vmem:[%s2 + $0x4c] sm:$0xf]
        %v1107 = vld [vmem:[%s2 + $0x50] sm:$0x1]
        %v1108 = vld [vmem:[%s3 + $0x80] sm:$0xff]
        %v1109 = vld [vmem:[%s3 + $0x88] sm:$0xff]
        %v1110 = vld [vmem:[%s3 + $0x90] sm:$0xff]
        %v1111 = vld [vmem:[%s3 + $0x98] sm:$0xff]
        %v1112 = vld [vmem:[%s3 + $0xa0] sm:$0x1]
        %1114 = vset.pattern.permute.xlu0 0
        %1115 = vperm.xlu0 %1114, %v1108
        %v1116 = vpop.permute.xlu0 %1115
        %1119 = vset.pattern.permute.xlu0 0
        %1120 = vperm.xlu0 %1119, %v1109
        %v1121 = vpop.permute.xlu0 %1120
        %1124 = vset.pattern.permute.xlu0 0
        %1125 = vperm.xlu0 %1124, %v1110
        %v1126 = vpop.permute.xlu0 %1125
        %1129 = vset.pattern.permute.xlu0 0
        %1130 = vperm.xlu0 %1129, %v1111
        %v1131 = vpop.permute.xlu0 %1130
        %1134 = vset.pattern.permute.xlu0 0
        %1135 = vperm.xlu0 %1134, %v1112
        %v1136 = vpop.permute.xlu0 %1135
        %v1143 = vunpack.c.l.b16 %v1103
        %v1144 = vunpack.c.l.b16 %v1104
        %v1145 = vunpack.c.l.b16 %v1105
        %v1146 = vunpack.c.l.b16 %v1106
        %v1147 = vunpack.c.l.b16 %v1107
        %v1148 = vpack.c.b16 %v1144, %v1143
        %v1149 = vpack.c.b16 %v1146, %v1145
        %v1150 = vpack.c.b16 %v1147, %v1147
        %v1152 = vsel %vm486, %v1148, 0
        %v1155 = vsel %vm486, %v1149, 0
        %v1158 = vsel %vm486, %v1150, 0
        %1160 = vmatprep.subr.bf16.mxu0 0
        %1161 = vmatpush1.bf16.msra.mxu0 0
        %1162 = vmatprep.subr.bf16.mxu0 0
        %1163 = vmatpush1.bf16.msra.mxu0 0
        %1164 = vmatprep.subr.bf16.mxu0 0
        %1165 = vmatpush1.bf16.msra.mxu0 0
        %1166 = vmatprep.subr.bf16.mxu0 0
        %1167 = vmatpush1.bf16.msra.mxu0 0
        %1168 = vmatprep.subr.bf16.mxu0 0
        %1169 = vmatpush1.bf16.msra.mxu0 0
        %1170 = vmatprep.subr.bf16.mxu0 0
        %1171 = vmatpush1.bf16.msra.mxu0 0
        %1172 = vmatprep.subr.bf16.mxu0 %v1100
        %1173 = vmatpush1.bf16.msra.mxu0 %v1099
        %1174 = vmatprep.subr.bf16.mxu0 %v1096
        %1175 = vmatpush1.bf16.msra.mxu0 %v1095
        %1176 = vmatprep.subr.bf16.mxu0 0
        %1177 = vmatpush2.bf16.msra.mxu0 0
        %1178 = vmatprep.subr.bf16.mxu0 0
        %1179 = vmatpush2.bf16.msra.mxu0 0
        %1180 = vmatprep.subr.bf16.mxu0 0
        %1181 = vmatpush2.bf16.msra.mxu0 0
        %1182 = vmatprep.subr.bf16.mxu0 0
        %1183 = vmatpush2.bf16.msra.mxu0 0
        %1184 = vmatprep.subr.bf16.mxu0 0
        %1185 = vmatpush2.bf16.msra.mxu0 0
        %1186 = vmatprep.subr.bf16.mxu0 0
        %1187 = vmatpush2.bf16.msra.mxu0 0
        %1188 = vmatprep.subr.bf16.mxu0 0
        %1189 = vmatpush2.bf16.msra.mxu0 0
        %1190 = vmatprep.subr.bf16.mxu0 0
        %1191 = vmatpush2.bf16.msra.mxu0 0
        %1192 = vmatprep.mubr.bf16.mxu0 0
        %1193 = vmatmul.mubr.bf16.gmra.mxu0 %v1152
        %v1194 = vpop.f32.mrf.mxu0
        %v1195 = vadd.f32 %v1116, %v1194
        %v1196 = vpop.f32.mrf.mxu0
        %v1197 = vadd.f32 %v1116, %v1196
        %v1198 = vpop.f32.mrf.mxu0
        %v1199 = vadd.f32 %v1121, %v1198
        %v1200 = vpop.f32.mrf.mxu0
        %v1201 = vadd.f32 %v1121, %v1200
        %1202 = vmatprep.mubr.bf16.mxu0 0
        %1203 = vmatmul.mubr.bf16.gmra.mxu0 %v1155
        %v1204 = vpop.f32.mrf.mxu0
        %v1205 = vadd.f32 %v1126, %v1204
        %v1206 = vpop.f32.mrf.mxu0
        %v1207 = vadd.f32 %v1126, %v1206
        %v1208 = vpop.f32.mrf.mxu0
        %v1209 = vadd.f32 %v1131, %v1208
        %v1210 = vpop.f32.mrf.mxu0
        %v1211 = vadd.f32 %v1131, %v1210
        %1212 = vmatprep.mubr.bf16.mxu0 0
        %1213 = vmatmul.mubr.bf16.gmra.mxu0 %v1158
        %v1214 = vpop.f32.mrf.mxu0
        %v1215 = vadd.f32 %v1136, %v1214
        %v1216 = vpop.f32.mrf.mxu0
        %v1217 = vadd.f32 %v1136, %v1216
        %v1218 = vpop.f32.mrf.mxu0
        %v1219 = vpop.f32.mrf.mxu0
        %1220 = vdwg.mxu0
        %1221 = vmatprep.subr.bf16.mxu0 0
        %1222 = vmatpush1.bf16.msra.mxu0 0
        %1223 = vmatprep.subr.bf16.mxu0 0
        %1224 = vmatpush1.bf16.msra.mxu0 0
        %1225 = vmatprep.subr.bf16.mxu0 0
        %1226 = vmatpush1.bf16.msra.mxu0 0
        %1227 = vmatprep.subr.bf16.mxu0 0
        %1228 = vmatpush1.bf16.msra.mxu0 0
        %1229 = vmatprep.subr.bf16.mxu0 0
        %1230 = vmatpush1.bf16.msra.mxu0 0
        %1231 = vmatprep.subr.bf16.mxu0 0
        %1232 = vmatpush1.bf16.msra.mxu0 0
        %1233 = vmatprep.subr.bf16.mxu0 %v1102
        %1234 = vmatpush1.bf16.msra.mxu0 %v1101
        %1235 = vmatprep.subr.bf16.mxu0 %v1098
        %1236 = vmatpush1.bf16.msra.mxu0 %v1097
        %1237 = vmatprep.subr.bf16.mxu0 0
        %1238 = vmatpush2.bf16.msra.mxu0 0
        %1239 = vmatprep.subr.bf16.mxu0 0
        %1240 = vmatpush2.bf16.msra.mxu0 0
        %1241 = vmatprep.subr.bf16.mxu0 0
        %1242 = vmatpush2.bf16.msra.mxu0 0
        %1243 = vmatprep.subr.bf16.mxu0 0
        %1244 = vmatpush2.bf16.msra.mxu0 0
        %1245 = vmatprep.subr.bf16.mxu0 0
        %1246 = vmatpush2.bf16.msra.mxu0 0
        %1247 = vmatprep.subr.bf16.mxu0 0
        %1248 = vmatpush2.bf16.msra.mxu0 0
        %1249 = vmatprep.subr.bf16.mxu0 0
        %1250 = vmatpush2.bf16.msra.mxu0 0
        %1251 = vmatprep.subr.bf16.mxu0 0
        %1252 = vmatpush2.bf16.msra.mxu0 0
        %1253 = vmatprep.mubr.bf16.mxu0 0
        %1254 = vmatmul.mubr.bf16.gmra.mxu0 %v1152
        %v1255 = vpop.f32.mrf.mxu0
        %v1256 = vadd.f32 %v1116, %v1255
        %v1257 = vpop.f32.mrf.mxu0
        %v1258 = vadd.f32 %v1116, %v1257
        %v1259 = vpop.f32.mrf.mxu0
        %v1260 = vadd.f32 %v1121, %v1259
        %v1261 = vpop.f32.mrf.mxu0
        %v1262 = vadd.f32 %v1121, %v1261
        %1263 = vmatprep.mubr.bf16.mxu0 0
        %1264 = vmatmul.mubr.bf16.gmra.mxu0 %v1155
        %v1265 = vpop.f32.mrf.mxu0
        %v1266 = vadd.f32 %v1126, %v1265
        %v1267 = vpop.f32.mrf.mxu0
        %v1268 = vadd.f32 %v1126, %v1267
        %v1269 = vpop.f32.mrf.mxu0
        %v1270 = vadd.f32 %v1131, %v1269
        %v1271 = vpop.f32.mrf.mxu0
        %v1272 = vadd.f32 %v1131, %v1271
        %1273 = vmatprep.mubr.bf16.mxu0 0
        %1274 = vmatmul.mubr.bf16.gmra.mxu0 %v1158
        %v1275 = vpop.f32.mrf.mxu0
        %v1276 = vadd.f32 %v1136, %v1275
        %v1277 = vpop.f32.mrf.mxu0
        %v1278 = vadd.f32 %v1136, %v1277
        %v1279 = vpop.f32.mrf.mxu0
        %v1280 = vpop.f32.mrf.mxu0
        %1281 = vdwg.mxu0
        %v1282 = vpack.c.bf16 %v1199, %v1195
        %v1283 = vpack.c.bf16 %v1201, %v1197
        %v1284 = vpack.c.bf16 %v1260, %v1256
        %v1285 = vpack.c.bf16 %v1262, %v1258
        %v1286 = vpack.c.bf16 %v1209, %v1205
        %v1287 = vpack.c.bf16 %v1211, %v1207
        %v1288 = vpack.c.bf16 %v1270, %v1266
        %v1289 = vpack.c.bf16 %v1272, %v1268
        %v1290 = vld [vmem:[%s2 + $0x58] sm:$0xf]
        %v1291 = vld [vmem:[%s2 + $0x5c] sm:$0xf]
        %v1292 = vld [vmem:[%s3 + $0xb0] sm:$0xff]
        %v1293 = vld [vmem:[%s3 + $0xb8] sm:$0xff]
        %v1294 = vunpack.c.l.bf16 %v1290
        %v1295 = vunpack.c.l.bf16 %v1291
        %s1296 = smul.u32 %s20, 128
        %s1297 = sld [smem:[#allocation2 + %s1296]]
        %v1298 = vstv %s1297
        %v1299 = vmul.f32 %v1294, %v1298
        %v1300 = vmul.f32 %v1295, %v1298
        %1303 = vrot.lane.b32.xlu0 %v1299, 96
        %v1304 = vpop.permute.xlu0 %1303
        %1305 = vrot.lane.b32.xlu0 %v1300, 96
        %v1306 = vpop.permute.xlu0 %1305
        %v1309 = vadd.f32 %v1292, %v1304
        %v1310 = vadd.f32 %v1293, %v1306
        %s1311 = sadd.s32 %s1296, 1
        %s1312 = sld [smem:[#allocation2 + %s1311]]
        %v1313 = vstv %s1312
        %v1314 = vmul.f32 %v1294, %v1313
        %v1315 = vmul.f32 %v1295, %v1313
        %1318 = vrot.lane.b32.xlu0 %v1314, 95
        %v1319 = vpop.permute.xlu0 %1318
        %1320 = vrot.lane.b32.xlu0 %v1315, 95
        %v1321 = vpop.permute.xlu0 %1320
        %v1324 = vadd.f32 %v1309, %v1319
        %v1325 = vadd.f32 %v1310, %v1321
        %s1326 = sadd.s32 %s1296, 2
        %s1327 = sld [smem:[#allocation2 + %s1326]]
        %v1328 = vstv %s1327
        %v1329 = vmul.f32 %v1294, %v1328
        %v1330 = vmul.f32 %v1295, %v1328
        %1333 = vrot.lane.b32.xlu0 %v1329, 94
        %v1334 = vpop.permute.xlu0 %1333
        %1335 = vrot.lane.b32.xlu0 %v1330, 94
        %v1336 = vpop.permute.xlu0 %1335
        %v1339 = vadd.f32 %v1324, %v1334
        %v1340 = vadd.f32 %v1325, %v1336
        %s1341 = sadd.s32 %s1296, 3
        %s1342 = sld [smem:[#allocation2 + %s1341]]
        %v1343 = vstv %s1342
        %v1344 = vmul.f32 %v1294, %v1343
        %v1345 = vmul.f32 %v1295, %v1343
        %1348 = vrot.lane.b32.xlu0 %v1344, 93
        %v1349 = vpop.permute.xlu0 %1348
        %1350 = vrot.lane.b32.xlu0 %v1345, 93
        %v1351 = vpop.permute.xlu0 %1350
        %v1354 = vadd.f32 %v1339, %v1349
        %v1355 = vadd.f32 %v1340, %v1351
        %1357 = vset.pattern.permute.xlu0 0
        %1358 = vperm.xlu0 %1357, %v1354
        %v1359 = vpop.permute.xlu0 %1358
        %1362 = vset.pattern.permute.xlu0 0
        %1363 = vperm.xlu0 %1362, %v1355
        %v1364 = vpop.permute.xlu0 %1363
        %v1368 = vunpack.c.l.b16 %v1290
        %v1369 = vunpack.c.l.b16 %v1291
        %v1370 = vpack.c.b16 %v1369, %v1368
        %v1372 = vsel %vm486, %v1370, 0
        %1374 = vmatprep.subr.bf16.mxu0 0
        %1375 = vmatpush1.bf16.msra.mxu0 0
        %1376 = vmatprep.subr.bf16.mxu0 0
        %1377 = vmatpush1.bf16.msra.mxu0 0
        %1378 = vmatprep.subr.bf16.mxu0 0
        %1379 = vmatpush1.bf16.msra.mxu0 0
        %1380 = vmatprep.subr.bf16.mxu0 0
        %1381 = vmatpush1.bf16.msra.mxu0 0
        %1382 = vmatprep.subr.bf16.mxu0 0
        %1383 = vmatpush1.bf16.msra.mxu0 0
        %1384 = vmatprep.subr.bf16.mxu0 0
        %1385 = vmatpush1.bf16.msra.mxu0 0
        %1386 = vmatprep.subr.bf16.mxu0 %v1287
        %1387 = vmatpush1.bf16.msra.mxu0 %v1286
        %1388 = vmatprep.subr.bf16.mxu0 %v1283
        %1389 = vmatpush1.bf16.msra.mxu0 %v1282
        %1390 = vmatprep.subr.bf16.mxu0 0
        %1391 = vmatpush2.bf16.msra.mxu0 0
        %1392 = vmatprep.subr.bf16.mxu0 0
        %1393 = vmatpush2.bf16.msra.mxu0 0
        %1394 = vmatprep.subr.bf16.mxu0 0
        %1395 = vmatpush2.bf16.msra.mxu0 0
        %1396 = vmatprep.subr.bf16.mxu0 0
        %1397 = vmatpush2.bf16.msra.mxu0 0
        %1398 = vmatprep.subr.bf16.mxu0 0
        %1399 = vmatpush2.bf16.msra.mxu0 0
        %1400 = vmatprep.subr.bf16.mxu0 0
        %1401 = vmatpush2.bf16.msra.mxu0 0
        %1402 = vmatprep.subr.bf16.mxu0 0
        %1403 = vmatpush2.bf16.msra.mxu0 0
        %1404 = vmatprep.subr.bf16.mxu0 0
        %1405 = vmatpush2.bf16.msra.mxu0 0
        %1406 = vmatprep.mubr.bf16.mxu0 0
        %1407 = vmatmul.mubr.bf16.gmra.mxu0 %v1372
        %v1408 = vpop.f32.mrf.mxu0
        %v1409 = vadd.f32 %v1359, %v1408
        %v1410 = vpop.f32.mrf.mxu0
        %v1411 = vadd.f32 %v1359, %v1410
        %v1412 = vpop.f32.mrf.mxu0
        %v1413 = vadd.f32 %v1364, %v1412
        %v1414 = vpop.f32.mrf.mxu0
        %v1415 = vadd.f32 %v1364, %v1414
        %1416 = vdwg.mxu0
        %1417 = vmatprep.subr.bf16.mxu0 0
        %1418 = vmatpush1.bf16.msra.mxu0 0
        %1419 = vmatprep.subr.bf16.mxu0 0
        %1420 = vmatpush1.bf16.msra.mxu0 0
        %1421 = vmatprep.subr.bf16.mxu0 0
        %1422 = vmatpush1.bf16.msra.mxu0 0
        %1423 = vmatprep.subr.bf16.mxu0 0
        %1424 = vmatpush1.bf16.msra.mxu0 0
        %1425 = vmatprep.subr.bf16.mxu0 0
        %1426 = vmatpush1.bf16.msra.mxu0 0
        %1427 = vmatprep.subr.bf16.mxu0 0
        %1428 = vmatpush1.bf16.msra.mxu0 0
        %1429 = vmatprep.subr.bf16.mxu0 %v1289
        %1430 = vmatpush1.bf16.msra.mxu0 %v1288
        %1431 = vmatprep.subr.bf16.mxu0 %v1285
        %1432 = vmatpush1.bf16.msra.mxu0 %v1284
        %1433 = vmatprep.subr.bf16.mxu0 0
        %1434 = vmatpush2.bf16.msra.mxu0 0
        %1435 = vmatprep.subr.bf16.mxu0 0
        %1436 = vmatpush2.bf16.msra.mxu0 0
        %1437 = vmatprep.subr.bf16.mxu0 0
        %1438 = vmatpush2.bf16.msra.mxu0 0
        %1439 = vmatprep.subr.bf16.mxu0 0
        %1440 = vmatpush2.bf16.msra.mxu0 0
        %1441 = vmatprep.subr.bf16.mxu0 0
        %1442 = vmatpush2.bf16.msra.mxu0 0
        %1443 = vmatprep.subr.bf16.mxu0 0
        %1444 = vmatpush2.bf16.msra.mxu0 0
        %1445 = vmatprep.subr.bf16.mxu0 0
        %1446 = vmatpush2.bf16.msra.mxu0 0
        %1447 = vmatprep.subr.bf16.mxu0 0
        %1448 = vmatpush2.bf16.msra.mxu0 0
        %1449 = vmatprep.mubr.bf16.mxu0 0
        %1450 = vmatmul.mubr.bf16.gmra.mxu0 %v1372
        %v1451 = vpop.f32.mrf.mxu0
        %v1452 = vadd.f32 %v1359, %v1451
        %v1453 = vpop.f32.mrf.mxu0
        %v1454 = vadd.f32 %v1359, %v1453
        %v1455 = vpop.f32.mrf.mxu0
        %v1456 = vadd.f32 %v1364, %v1455
        %v1457 = vpop.f32.mrf.mxu0
        %v1458 = vadd.f32 %v1364, %v1457
        %1459 = vdwg.mxu0
        %v1460 = vmax.f32 %v1409, 0.0
        %v1461 = vmax.f32 %v1411, 0.0
        %v1462 = vmax.f32 %v1452, 0.0
        %v1463 = vmax.f32 %v1454, 0.0
        %v1464 = vmax.f32 %v1413, 0.0
        %v1465 = vmax.f32 %v1415, 0.0
        %v1466 = vmax.f32 %v1456, 0.0
        %v1467 = vmax.f32 %v1458, 0.0
        %v1468 = vpack.c.bf16 %v1464, %v1460
        %v1469 = vpack.c.bf16 %v1465, %v1461
        %v1470 = vpack.c.bf16 %v1466, %v1462
        %v1471 = vpack.c.bf16 %v1467, %v1463
        %v1472 = vld [vmem:[%s2 + $0x60] sm:$0x3]
        %v1473 = vld [vmem:[%s3 + $0xc0] sm:$0x7]
        %1475 = vset.pattern.permute.xlu0 0
        %1476 = vperm.xlu0 %1475, %v1473
        %v1477 = vpop.permute.xlu0 %1476
        %vm1479 = vcmask 130048
        %v1481 = vsel %vm1479, %v1472, 0
        %1483 = vmatprep.subr.bf16.mxu0 0
        %1484 = vmatpush1.bf16.msra.mxu0 0
        %1485 = vmatprep.subr.bf16.mxu0 0
        %1486 = vmatpush1.bf16.msra.mxu0 0
        %1487 = vmatprep.subr.bf16.mxu0 0
        %1488 = vmatpush1.bf16.msra.mxu0 0
        %1489 = vmatprep.subr.bf16.mxu0 0
        %1490 = vmatpush1.bf16.msra.mxu0 0
        %1491 = vmatprep.subr.bf16.mxu0 0
        %1492 = vmatpush1.bf16.msra.mxu0 0
        %1493 = vmatprep.subr.bf16.mxu0 0
        %1494 = vmatpush1.bf16.msra.mxu0 0
        %1495 = vmatprep.subr.bf16.mxu0 0
        %1496 = vmatpush1.bf16.msra.mxu0 0
        %1497 = vmatprep.subr.bf16.mxu0 %v1469
        %1498 = vmatpush1.bf16.msra.mxu0 %v1468
        %1499 = vmatprep.subr.bf16.mxu0 0
        %1500 = vmatpush2.bf16.msra.mxu0 0
        %1501 = vmatprep.subr.bf16.mxu0 0
        %1502 = vmatpush2.bf16.msra.mxu0 0
        %1503 = vmatprep.subr.bf16.mxu0 0
        %1504 = vmatpush2.bf16.msra.mxu0 0
        %1505 = vmatprep.subr.bf16.mxu0 0
        %1506 = vmatpush2.bf16.msra.mxu0 0
        %1507 = vmatprep.subr.bf16.mxu0 0
        %1508 = vmatpush2.bf16.msra.mxu0 0
        %1509 = vmatprep.subr.bf16.mxu0 0
        %1510 = vmatpush2.bf16.msra.mxu0 0
        %1511 = vmatprep.subr.bf16.mxu0 0
        %1512 = vmatpush2.bf16.msra.mxu0 0
        %1513 = vmatprep.subr.bf16.mxu0 0
        %1514 = vmatpush2.bf16.msra.mxu0 0
        %1515 = vmatprep.mubr.bf16.mxu0 0
        %1516 = vmatmul.mubr.bf16.gmra.mxu0 %v1481
        %v1517 = vpop.f32.mrf.mxu0
        %v1518 = vadd.f32 %v1477, %v1517
        %v1519 = vpop.f32.mrf.mxu0
        %v1520 = vadd.f32 %v1477, %v1519
        %v1521 = vpop.f32.mrf.mxu0
        %v1522 = vpop.f32.mrf.mxu0
        %1523 = vdwg.mxu0
        %1524 = vmatprep.subr.bf16.mxu0 0
        %1525 = vmatpush1.bf16.msra.mxu0 0
        %1526 = vmatprep.subr.bf16.mxu0 0
        %1527 = vmatpush1.bf16.msra.mxu0 0
        %1528 = vmatprep.subr.bf16.mxu0 0
        %1529 = vmatpush1.bf16.msra.mxu0 0
        %1530 = vmatprep.subr.bf16.mxu0 0
        %1531 = vmatpush1.bf16.msra.mxu0 0
        %1532 = vmatprep.subr.bf16.mxu0 0
        %1533 = vmatpush1.bf16.msra.mxu0 0
        %1534 = vmatprep.subr.bf16.mxu0 0
        %1535 = vmatpush1.bf16.msra.mxu0 0
        %1536 = vmatprep.subr.bf16.mxu0 0
        %1537 = vmatpush1.bf16.msra.mxu0 0
        %1538 = vmatprep.subr.bf16.mxu0 %v1471
        %1539 = vmatpush1.bf16.msra.mxu0 %v1470
        %1540 = vmatprep.subr.bf16.mxu0 0
        %1541 = vmatpush2.bf16.msra.mxu0 0
        %1542 = vmatprep.subr.bf16.mxu0 0
        %1543 = vmatpush2.bf16.msra.mxu0 0
        %1544 = vmatprep.subr.bf16.mxu0 0
        %1545 = vmatpush2.bf16.msra.mxu0 0
        %1546 = vmatprep.subr.bf16.mxu0 0
        %1547 = vmatpush2.bf16.msra.mxu0 0
        %1548 = vmatprep.subr.bf16.mxu0 0
        %1549 = vmatpush2.bf16.msra.mxu0 0
        %1550 = vmatprep.subr.bf16.mxu0 0
        %1551 = vmatpush2.bf16.msra.mxu0 0
        %1552 = vmatprep.subr.bf16.mxu0 0
        %1553 = vmatpush2.bf16.msra.mxu0 0
        %1554 = vmatprep.subr.bf16.mxu0 0
        %1555 = vmatpush2.bf16.msra.mxu0 0
        %1556 = vmatprep.mubr.bf16.mxu0 0
        %1557 = vmatmul.mubr.bf16.gmra.mxu0 %v1481
        %v1558 = vpop.f32.mrf.mxu0
        %v1559 = vadd.f32 %v1477, %v1558
        %v1560 = vpop.f32.mrf.mxu0
        %v1561 = vadd.f32 %v1477, %v1560
        %v1562 = vpop.f32.mrf.mxu0
        %v1563 = vpop.f32.mrf.mxu0
        %1564 = vdwg.mxu0
        %v1569 = vrot.slane %v1215, 5
        %v1570 = vrot.slane %v1217, 5
        %v1571 = vrot.slane %v1276, 5
        %v1572 = vrot.slane %v1278, 5
        %vm1577 = vcmask 1042432
        %v1578 = vsel %vm1577, %v1518, %v1569
        %v1579 = vsel %vm1577, %v1520, %v1570
        %v1580 = vsel %vm1577, %v1559, %v1571
        %v1581 = vsel %vm1577, %v1561, %v1572
        %v1586 = vcombine.low %v1578, %v1579
        %v1587 = vcombine.low %v1580, %v1581
        %1590 = vst [vmem:[%s249] sm:$0xff] %v1586
        %1591 = vst [vmem:[%s249 + $0x8] sm:$0xff] %v1587
        %s1592 = smul.u32 4, %s21
        %p1593 = scmp.lt.s32.totalorder %s20, 3
        %s1594 = scalar_select %p1593, %s20, 3
        %p1595 = scmp.lt.s32.totalorder %s1592, 3
        %s1596 = scalar_select %p1595, %s1592, 3
        %s1597 = smul.addr %s1594, 4
        %s1598 = sadd.s32 %s1596, %s1597
        %s1599 = smul.addr %s1598, 4
        %s1600 = scalar_lea.vmem %s4, %s1599
        // Predicated region
        $region41: #{mlp_forward.1} parent=35 // pred_check
          %p1601 = pneg %p139
        $region42: #{mlp_forward.1} parent=35 // pred_check_branch
          %1603 = sbr.rel (%p1601) target = $region44
        $region43: #{mlp_forward.1} parent=35 // pred_region
          %s1604 = smul.u32 4, %s21
        $region44: #{mlp_forward.1} parent=35 // pred_fallthru
          _
      $region36: #{mlp_forward.1} parent=5 // pred_fallthru
        _
      %p1605 = scmp.le.s32.totalorder 2, %s11
      // Predicated region
      $region45: #{mlp_forward.1} parent=5 // pred_check
        %p1606 = pneg %p1605
      $region46: #{mlp_forward.1} parent=5 // pred_check_branch
        %1608 = sbr.rel (%p1606) target = $region48
      $region47: #{mlp_forward.1} parent=5 // pred_region
        %s1609 = ssub.s32 %s11, 2
        // Predicated region
        $region49: #{mlp_forward.1} parent=47 // pred_check
          %p1610 = pneg %p145
        $region50: #{mlp_forward.1} parent=47 // pred_check_branch
          %1612 = sbr.rel (%p1610) target = $region52
        $region51: #{mlp_forward.1} parent=47 // pred_region
          %s1613 = smul.u32 4, %s23
          %p1614 = scmp.lt.s32.totalorder %s22, 3
          %s1615 = scalar_select %p1614, %s22, 3
          %p1616 = scmp.lt.s32.totalorder %s1613, 3
          %s1617 = scalar_select %p1616, %s1613, 3
          %s1618 = smul.addr %s1615, 4
          %s1619 = sadd.s32 %s1617, %s1618
          %s1620 = smul.addr %s1619, 4
          %s1621 = scalar_lea.vmem %s4, %s1620
        $region52: #{mlp_forward.1} parent=47 // pred_fallthru
          _
      $region48: #{mlp_forward.1} parent=5 // pred_fallthru
        _
    $region6: #{mlp_forward.1} parent=1 // loop_footer
      %s15 = sadd.s32 1, %s11
    $region7: #{mlp_forward.1} parent=1 // loop_footer_branch
      %10 = sbr.rel target = $region3
    $region8: #{mlp_forward.1} parent=1 // loop_exit
      _
    %1622 = vsyncpa [#allocation3], 1
    %s1623 = scalar_lea.sflag [#allocation3], 1
    %1624 = vsyncpa %s1623, 1

</llo_original>
